<compile_context>
chip_gen: v7x
topology: tpu7x:2x2x1
jax: 0.10.0
libtpu: 0.0.40
codegen_flags: <defaults>
</compile_context>

<pallas_src>
import functools

import numpy as np

import jax
import jax.numpy as jnp
from jax import lax
from jax.experimental import pallas as pl
from jax.experimental.pallas import tpu as pltpu

LANE = 128        # lane width; every kernel operand is padded to 128 lanes
SUBLANE = 8       # f32 sublane tile
NUM_CLASSES = 10


# ----------------------------------------------------------------------------
# Fused forward kernel: one image per grid step, three MXU matmuls total.
#   xs_ref : (1, HW, 128) bf16  5x5 im2col slab of the zero-padded input
#   w1_ref : (128, 128)   bf16  "shifted conv1" weight, tap-packed columns
#   b1_ref : (1, 128)     f32   conv1 bias tiled over the 9 tap lane groups
#   m2_ref : (HW, 128)    bf16  0/1 validity mask for conv2's 'same' padding
#   w2_ref : (128, 128)   bf16  conv2 weight with (tap, c1) packed into K
#   b2_ref : (1, 128)     f32
#   wc_ref : (128, 128)   f32   classifier weight, pre-scaled by 1/(H*W)
#   bc_ref : (1, 128)     f32
#   o_ref  : (1, 8, 128)  f32   logits broadcast over 8 sublanes (dense store)
# ----------------------------------------------------------------------------
def _fused_forward_kernel(xs_ref, w1_ref, b1_ref, m2_ref, w2_ref, b2_ref,
                          wc_ref, bc_ref, o_ref, *, slope):
    # --- conv1 + LeakyReLU, evaluated at all 9 conv2 tap offsets at once ----
    # z[p, t*c1 + c] = LeakyReLU(conv1(x))[p + s_t, c]   (s_t = oh*W + ow)
    z = jnp.dot(xs_ref[0], w1_ref[...], preferred_element_type=jnp.float32)
    z = z + b1_ref[...]
    z = jnp.where(z > 0, z, slope * z)                     # (HW, 128) f32

    # --- conv2 + LeakyReLU ---------------------------------------------------
    # Taps live in disjoint lane groups, so a single post-hoc 0/1 mask multiply
    # implements conv2's zero 'same' padding exactly.
    s2 = z.astype(jnp.bfloat16) * m2_ref[...]              # (HW, 128) bf16
    y2 = jnp.dot(s2, w2_ref[...], preferred_element_type=jnp.float32)
    y2 = y2 + b2_ref[...]
    y2 = jnp.where(y2 > 0, y2, slope * y2)                 # (HW, 128) f32

    # --- global average pool + linear classifier -----------------------------
    # (the pool's 1/(H*W) is folded into wc by pack_params)
    pooled = jnp.sum(y2, axis=0, keepdims=True)            # (1, 128)
    logits = jnp.dot(pooled, wc_ref[...],
                     preferred_element_type=jnp.float32) + bc_ref[...]
    o_ref[...] = jnp.broadcast_to(logits, o_ref.shape)


# ----------------------------------------------------------------------------
# Wrapper-side input prep: 5x5 im2col of the zero-padded image.
# Lane layout: K(dy, dx, ci) = ((dy+2)*5 + (dx+2))*C_in + ci,  dy,dx in [-2,2].
# Same HBM footprint as a 128-lane-padded copy of x (smaller in bf16).
# ----------------------------------------------------------------------------
def _build_conv1_slab(x_nchw):
    n, c_in, h, w = x_nchw.shape
    assert 25 * c_in <= LANE, "25 * C_in must fit in 128 lanes"
    x = jnp.transpose(x_nchw, (0, 2, 3, 1)).astype(jnp.float32)   # NHWC
    xp = jnp.pad(x, ((0, 0), (2, 2), (2, 2), (0, 0)))
    cols = []
    for dy in range(-2, 3):
        for dx in range(-2, 3):
            cols.append(xp[:, dy + 2:dy + 2 + h, dx + 2:dx + 2 + w, :])
    slab = jnp.concatenate(cols, axis=-1).reshape(n, h * w, 25 * c_in)
    slab = jnp.pad(slab, ((0, 0), (0, 0), (0, LANE - 25 * c_in)))
    return slab.astype(jnp.bfloat16)


def total_net_forward(packed, x_nchw, *, num_classes, slope=0.1):
    n, _, h, w = x_nchw.shape
    hw = h * w
    assert packed["mask2"].shape == (hw, LANE), "params packed for other H, W"

    x_slab = _build_conv1_slab(x_nchw)                      # (N, HW, 128) bf16

    out = pl.pallas_call(
        functools.partial(_fused_forward_kernel, slope=slope),
        out_shape=jax.ShapeDtypeStruct((n, SUBLANE, LANE), jnp.float32),
        grid=(n,),
        in_specs=[
            pl.BlockSpec((1, hw, LANE), lambda i: (i, 0, 0)),   # x slab
            pl.BlockSpec((LANE, LANE), lambda i: (0, 0)),       # w1big (bf16)
            pl.BlockSpec((1, LANE), lambda i: (0, 0)),          # b1 tiled
            pl.BlockSpec((hw, LANE), lambda i: (0, 0)),         # conv2 mask
            pl.BlockSpec((LANE, LANE), lambda i: (0, 0)),       # w2 packed
            pl.BlockSpec((1, LANE), lambda i: (0, 0)),          # b2
            pl.BlockSpec((LANE, LANE), lambda i: (0, 0)),       # wc / (H*W)
            pl.BlockSpec((1, LANE), lambda i: (0, 0)),          # bc
        ],
        out_specs=pl.BlockSpec((1, SUBLANE, LANE), lambda i: (i, 0, 0)),
        compiler_params=pltpu.CompilerParams(
            dimension_semantics=("parallel",)),
    )(x_slab, packed["w1big"], packed["b1big"], packed["mask2"],
      packed["w2p"], packed["b2p"], packed["wc"], packed["bc"])

    return out[:, 0, :num_classes]


# ----------------------------------------------------------------------------
# Parameter packing (host side, done once).  Tap layout: t = kh*3 + kw,
# (oh, ow) = (t//3 - 1, t%3 - 1).
#   w1big[K(dy,dx,ci), t*c1+co] = w1[dy-oh+1, dx-ow+1, ci, co]  (0 outside 3x3)
#   w2p  [t*c1+ci,     co     ] = w2[t, ci, co]
#   mask2[p, t*c1 : (t+1)*c1]   = 1 iff the tap stays inside the image
#   wc is pre-scaled by 1/(H*W) to fold the average pool.
# ----------------------------------------------------------------------------
def pack_params(small, h, w):
    w1 = np.asarray(small["w1"], np.float32)        # (9, c_in, c1)
    b1 = np.asarray(small["b1"], np.float32)        # (c1,)
    w2 = np.asarray(small["w2"], np.float32)        # (9, c1, c2)
    b2 = np.asarray(small["b2"], np.float32)        # (c2,)
    wc = np.asarray(small["wc"], np.float32)        # (c2, ncls)
    bc = np.asarray(small["bc"], np.float32)        # (ncls,)
    _, c_in, c1 = w1.shape
    c2 = w2.shape[2]
    ncls = wc.shape[1]
    assert 25 * c_in <= LANE and 9 * c1 <= LANE and c2 <= LANE and ncls <= LANE

    w1big = np.zeros((LANE, LANE), np.float32)
    b1big = np.zeros((1, LANE), np.float32)
    for t in range(9):
        oh, ow = t // 3 - 1, t % 3 - 1
        b1big[0, t * c1:(t + 1) * c1] = b1
        for kh in range(3):
            for kw in range(3):
                dy, dx = oh + kh - 1, ow + kw - 1
                krow = ((dy + 2) * 5 + (dx + 2)) * c_in
                w1big[krow:krow + c_in, t * c1:(t + 1) * c1] = w1[kh * 3 + kw]

    w2p = np.zeros((LANE, LANE), np.float32)
    b2p = np.zeros((1, LANE), np.float32)
    b2p[0, :c2] = b2
    for t in range(9):
        w2p[t * c1:(t + 1) * c1, :c2] = w2[t]

    hh = np.arange(h)[:, None]
    ww = np.arange(w)[None, :]
    mask2 = np.zeros((h * w, LANE), np.float32)
    for t in range(9):
        oh, ow = t // 3 - 1, t % 3 - 1
        valid = ((hh + oh >= 0) & (hh + oh < h) &
                 (ww + ow >= 0) & (ww + ow < w))
        mask2[:, t * c1:(t + 1) * c1] = valid.reshape(h * w, 1)

    wcp = np.zeros((LANE, LANE), np.float32)
    wcp[:c2, :ncls] = wc / float(h * w)             # fold average-pool scale
    bcp = np.zeros((1, LANE), np.float32)
    bcp[0, :ncls] = bc

    return {
        "w1big": jnp.asarray(w1big, jnp.bfloat16),
        "b1big": jnp.asarray(b1big, jnp.float32),
        "mask2": jnp.asarray(mask2, jnp.bfloat16),
        "w2p": jnp.asarray(w2p, jnp.bfloat16),
        "b2p": jnp.asarray(b2p, jnp.float32),
        "wc": jnp.asarray(wcp, jnp.float32),
        "bc": jnp.asarray(bcp, jnp.float32),
    }


def init_params(key, c_in=4, c1=8, c2=16, num_classes=10):
    ks = jax.random.split(key, 6)
    s = 0.1
    return {
        "w1": s * jax.random.normal(ks[0], (9, c_in, c1), jnp.float32),
        "b1": s * jax.random.normal(ks[1], (c1,), jnp.float32),
        "w2": s * jax.random.normal(ks[2], (9, c1, c2), jnp.float32),
        "b2": s * jax.random.normal(ks[3], (c2,), jnp.float32),
        "wc": s * jax.random.normal(ks[4], (c2, num_classes), jnp.float32),
        "bc": s * jax.random.normal(ks[5], (num_classes,), jnp.float32),
    }


# Pure-JAX f32 reference of the same forward (for the correctness check).
def reference_forward(small, x_nchw, *, slope=0.1):
    x = jnp.transpose(x_nchw, (0, 2, 3, 1)).astype(jnp.float32)

    def conv_lrelu(x, w_taps, b):
        cin, cout = w_taps.shape[1], w_taps.shape[2]
        w = w_taps.reshape(3, 3, cin, cout)
        y = lax.conv_general_dilated(
            x, w, window_strides=(1, 1), padding=((1, 1), (1, 1)),
            dimension_numbers=("NHWC", "HWIO", "NHWC"),
            precision=lax.Precision.HIGHEST)
        y = y + b
        return jnp.where(y > 0, y, slope * y)

    y1 = conv_lrelu(x, small["w1"], small["b1"])
    y2 = conv_lrelu(y1, small["w2"], small["b2"])
    pooled = jnp.mean(y2, axis=(1, 2))
    return jnp.dot(pooled, small["wc"],
                   precision=lax.Precision.HIGHEST) + small["bc"]


# TODO(synk): ReverseCLS branch (classifier_reverse) is built in __init__ but
# unused in TotalNet.forward, so it is not implemented.

if __name__ == "__main__":
    key = jax.random.PRNGKey(0)
    k_x, k_p = jax.random.split(key)
    x = jax.random.normal(k_x, (2, 4, 16, 16), jnp.float32)  # NCHW like PyTorch
    small = init_params(k_p, c_in=4, c1=8, c2=16, num_classes=NUM_CLASSES)
    packed = pack_params(small, h=16, w=16)

    fwd = jax.jit(functools.partial(total_net_forward,
                                    num_classes=NUM_CLASSES))
    out = fwd(packed, x)
    jax.block_until_ready(out)
    assert out.shape == (2, NUM_CLASSES) and out.dtype == jnp.float32

    ref = reference_forward(small, x)
    max_err = float(jnp.max(jnp.abs(out - ref)))
    # bf16 MXU inputs with f32 accumulation vs. an f32 XLA reference.
    assert jnp.allclose(out, ref, atol=1e-2, rtol=1e-2), max_err

    print("KERNEL_OK")
</pallas_src>

<mosaic_0001>
module attributes {stable_mosaic.version = 11 : i64} {
  func.func @_fused_forward_kernel(%arg0: i32, %arg1: memref<1x256x128xbf16, #tpu.memory_space<vmem>>, %arg2: memref<128x128xbf16, #tpu.memory_space<vmem>>, %arg3: memref<1x128xf32, #tpu.memory_space<vmem>>, %arg4: memref<256x128xbf16, #tpu.memory_space<vmem>>, %arg5: memref<128x128xbf16, #tpu.memory_space<vmem>>, %arg6: memref<1x128xf32, #tpu.memory_space<vmem>>, %arg7: memref<128x128xf32, #tpu.memory_space<vmem>>, %arg8: memref<1x128xf32, #tpu.memory_space<vmem>>, %arg9: memref<1x8x128xf32, #tpu.memory_space<vmem>>) attributes {dimension_semantics = [#tpu.dimension_semantics<parallel>], iteration_bounds = array<i64: 2>, scalar_prefetch = 0 : i64, scratch_operands = 0 : i64, tpu.core_type = #tpu.core_type<tc>, window_params = [{transform_indices = @transform_0, window_bounds = array<i64: 1, 256, 128>}, {pipeline_mode = #tpu.pipeline_mode<synchronous>, transform_indices = @transform_1, window_bounds = array<i64: 128, 128>}, {pipeline_mode = #tpu.pipeline_mode<synchronous>, transform_indices = @transform_2, window_bounds = array<i64: 1, 128>}, {pipeline_mode = #tpu.pipeline_mode<synchronous>, transform_indices = @transform_3, window_bounds = array<i64: 256, 128>}, {pipeline_mode = #tpu.pipeline_mode<synchronous>, transform_indices = @transform_4, window_bounds = array<i64: 128, 128>}, {pipeline_mode = #tpu.pipeline_mode<synchronous>, transform_indices = @transform_5, window_bounds = array<i64: 1, 128>}, {pipeline_mode = #tpu.pipeline_mode<synchronous>, transform_indices = @transform_6, window_bounds = array<i64: 128, 128>}, {pipeline_mode = #tpu.pipeline_mode<synchronous>, transform_indices = @transform_7, window_bounds = array<i64: 1, 128>}, {transform_indices = @transform_8, window_bounds = array<i64: 1, 8, 128>}]} {
    %c0 = arith.constant 0 : index
    %c0_0 = arith.constant 0 : index
    %c0_1 = arith.constant 0 : index
    %0 = vector.load %arg1[%c0, %c0_0, %c0_1] : memref<1x256x128xbf16, #tpu.memory_space<vmem>>, vector<1x256x128xbf16>
    %1 = vector.shape_cast %0 : vector<1x256x128xbf16> to vector<256x128xbf16>
    %c0_2 = arith.constant 0 : index
    %c0_3 = arith.constant 0 : index
    %2 = vector.load %arg2[%c0_2, %c0_3] : memref<128x128xbf16, #tpu.memory_space<vmem>>, vector<128x128xbf16>
    %cst = arith.constant dense<0.000000e+00> : vector<256x128xf32>
    %3 = tpu.matmul %1, %2, %cst {dimension_numbers = #tpu.dot_dimension_numbers<[1], [0], [0], [1], [0, 0, 1, 1], [], []>} : vector<256x128xbf16>, vector<128x128xbf16>, vector<256x128xf32> -> vector<256x128xf32>
    %c0_4 = arith.constant 0 : index
    %c0_5 = arith.constant 0 : index
    %4 = vector.load %arg3[%c0_4, %c0_5] : memref<1x128xf32, #tpu.memory_space<vmem>>, vector<1x128xf32>
    %5 = vector.broadcast %4 : vector<1x128xf32> to vector<256x128xf32>
    %6 = arith.addf %3, %5 : vector<256x128xf32>
    %cst_6 = arith.constant 0.000000e+00 : f32
    %7 = vector.broadcast %cst_6 : f32 to vector<256x128xf32>
    %8 = arith.cmpf ogt, %6, %7 : vector<256x128xf32>
    %cst_7 = arith.constant 1.000000e-01 : f32
    %9 = vector.broadcast %cst_7 : f32 to vector<256x128xf32>
    %10 = arith.mulf %9, %6 : vector<256x128xf32>
    %11 = arith.select %8, %6, %10 : vector<256x128xi1>, vector<256x128xf32>
    %12 = arith.truncf %11 : vector<256x128xf32> to vector<256x128xbf16>
    %c0_8 = arith.constant 0 : index
    %c0_9 = arith.constant 0 : index
    %13 = vector.load %arg4[%c0_8, %c0_9] : memref<256x128xbf16, #tpu.memory_space<vmem>>, vector<256x128xbf16>
    %14 = arith.mulf %12, %13 : vector<256x128xbf16>
    %c0_10 = arith.constant 0 : index
    %c0_11 = arith.constant 0 : index
    %15 = vector.load %arg5[%c0_10, %c0_11] : memref<128x128xbf16, #tpu.memory_space<vmem>>, vector<128x128xbf16>
    %cst_12 = arith.constant dense<0.000000e+00> : vector<256x128xf32>
    %16 = tpu.matmul %14, %15, %cst_12 {dimension_numbers = #tpu.dot_dimension_numbers<[1], [0], [0], [1], [0, 0, 1, 1], [], []>} : vector<256x128xbf16>, vector<128x128xbf16>, vector<256x128xf32> -> vector<256x128xf32>
    %c0_13 = arith.constant 0 : index
    %c0_14 = arith.constant 0 : index
    %17 = vector.load %arg6[%c0_13, %c0_14] : memref<1x128xf32, #tpu.memory_space<vmem>>, vector<1x128xf32>
    %18 = vector.broadcast %17 : vector<1x128xf32> to vector<256x128xf32>
    %19 = arith.addf %16, %18 : vector<256x128xf32>
    %cst_15 = arith.constant 0.000000e+00 : f32
    %20 = vector.broadcast %cst_15 : f32 to vector<256x128xf32>
    %21 = arith.cmpf ogt, %19, %20 : vector<256x128xf32>
    %cst_16 = arith.constant 1.000000e-01 : f32
    %22 = vector.broadcast %cst_16 : f32 to vector<256x128xf32>
    %23 = arith.mulf %22, %19 : vector<256x128xf32>
    %24 = arith.select %21, %19, %23 : vector<256x128xi1>, vector<256x128xf32>
    %cst_17 = arith.constant dense<0.000000e+00> : vector<128xf32>
    %25 = vector.multi_reduction <add>, %24, %cst_17 [0] : vector<256x128xf32> to vector<128xf32>
    %26 = vector.shape_cast %25 : vector<128xf32> to vector<1x128xf32>
    %c0_18 = arith.constant 0 : index
    %c0_19 = arith.constant 0 : index
    %27 = vector.load %arg7[%c0_18, %c0_19] : memref<128x128xf32, #tpu.memory_space<vmem>>, vector<128x128xf32>
    %cst_20 = arith.constant dense<0.000000e+00> : vector<1x128xf32>
    %28 = tpu.matmul %26, %27, %cst_20 {dimension_numbers = #tpu.dot_dimension_numbers<[1], [0], [0], [1], [0, 0, 1, 1], [], []>} : vector<1x128xf32>, vector<128x128xf32>, vector<1x128xf32> -> vector<1x128xf32>
    %c0_21 = arith.constant 0 : index
    %c0_22 = arith.constant 0 : index
    %29 = vector.load %arg8[%c0_21, %c0_22] : memref<1x128xf32, #tpu.memory_space<vmem>>, vector<1x128xf32>
    %30 = arith.addf %28, %29 : vector<1x128xf32>
    %31 = vector.shape_cast %30 : vector<1x128xf32> to vector<1x1x128xf32>
    %32 = vector.broadcast %31 : vector<1x1x128xf32> to vector<1x8x128xf32>
    %c0_23 = arith.constant 0 : index
    %c0_24 = arith.constant 0 : index
    %c0_25 = arith.constant 0 : index
    %33 = vector.load %arg9[%c0_23, %c0_24, %c0_25] : memref<1x8x128xf32, #tpu.memory_space<vmem>>, vector<1x8x128xf32>
    tpu.vector_store %arg9[%c0_23, %c0_24, %c0_25], %32 {strides = array<i32>} : memref<1x8x128xf32, #tpu.memory_space<vmem>>, vector<1x8x128xf32>,
    return
  }
  func.func @transform_0(%arg0: i32) -> (i32, i32, i32) {
    %c0_i32 = arith.constant 0 : i32
    %c0_i32_0 = arith.constant 0 : i32
    %c0_i32_1 = arith.constant 0 : i32
    return %arg0, %c0_i32, %c0_i32_0 : i32, i32, i32
  }
  func.func @transform_1(%arg0: i32) -> (i32, i32) {
    %c0_i32 = arith.constant 0 : i32
    %c0_i32_0 = arith.constant 0 : i32
    %c0_i32_1 = arith.constant 0 : i32
    return %c0_i32, %c0_i32_0 : i32, i32
  }
  func.func @transform_2(%arg0: i32) -> (i32, i32) {
    %c0_i32 = arith.constant 0 : i32
    %c0_i32_0 = arith.constant 0 : i32
    %c0_i32_1 = arith.constant 0 : i32
    return %c0_i32, %c0_i32_0 : i32, i32
  }
  func.func @transform_3(%arg0: i32) -> (i32, i32) {
    %c0_i32 = arith.constant 0 : i32
    %c0_i32_0 = arith.constant 0 : i32
    %c0_i32_1 = arith.constant 0 : i32
    return %c0_i32, %c0_i32_0 : i32, i32
  }
  func.func @transform_4(%arg0: i32) -> (i32, i32) {
    %c0_i32 = arith.constant 0 : i32
    %c0_i32_0 = arith.constant 0 : i32
    %c0_i32_1 = arith.constant 0 : i32
    return %c0_i32, %c0_i32_0 : i32, i32
  }
  func.func @transform_5(%arg0: i32) -> (i32, i32) {
    %c0_i32 = arith.constant 0 : i32
    %c0_i32_0 = arith.constant 0 : i32
    %c0_i32_1 = arith.constant 0 : i32
    return %c0_i32, %c0_i32_0 : i32, i32
  }
  func.func @transform_6(%arg0: i32) -> (i32, i32) {
    %c0_i32 = arith.constant 0 : i32
    %c0_i32_0 = arith.constant 0 : i32
    %c0_i32_1 = arith.constant 0 : i32
    return %c0_i32, %c0_i32_0 : i32, i32
  }
  func.func @transform_7(%arg0: i32) -> (i32, i32) {
    %c0_i32 = arith.constant 0 : i32
    %c0_i32_0 = arith.constant 0 : i32
    %c0_i32_1 = arith.constant 0 : i32
    return %c0_i32, %c0_i32_0 : i32, i32
  }
  func.func @transform_8(%arg0: i32) -> (i32, i32, i32) {
    %c0_i32 = arith.constant 0 : i32
    %c0_i32_0 = arith.constant 0 : i32
    %c0_i32_1 = arith.constant 0 : i32
    return %arg0, %c0_i32, %c0_i32_0 : i32, i32, i32
  }
}

</mosaic_0001>

<llo_original>
// kernel: total_net_forward.1
$region0: #{total_net_forward.1}
  #allocation0 [shape = 'u32[]', space=smem, size = 0x4, offset = 0x4, fixed_abs, tag = 'smem constant byte address 0x4 - core index']
  #allocation1 [shape = 'u32[144,128]{1,0:T(1,128)}', space=vmem, size = 0x12000, scoped, tag = 'internal scratch']
  %s0 = inlined_call_operand.vmem [shape: bf16[2,256,128], index: 0, kind: input, shape index: {}]
  %s1 = inlined_call_operand.vmem [shape: bf16[128,128], index: 1, kind: input, shape index: {}]
  %s2 = inlined_call_operand.vmem [shape: f32[1,128], index: 2, kind: input, shape index: {}]
  %s3 = inlined_call_operand.vmem [shape: bf16[256,128], index: 3, kind: input, shape index: {}]
  %s4 = inlined_call_operand.vmem [shape: bf16[128,128], index: 4, kind: input, shape index: {}]
  %s5 = inlined_call_operand.vmem [shape: f32[1,128], index: 5, kind: input, shape index: {}]
  %s6 = inlined_call_operand.vmem [shape: f32[128,128], index: 6, kind: input, shape index: {}]
  %s7 = inlined_call_operand.vmem [shape: f32[1,128], index: 7, kind: input, shape index: {}]
  %s8 = inlined_call_operand.vmem [shape: f32[2,8,128], index: 8, kind: output, shape index: {}]
  %s9 = sld [smem:[#allocation0]]
  $region65: #{total_net_forward.1} parent=0
    _
  %s11 = ssub.s32 1, %s9
  %s12 = scalar_select 0, %s11, %s9
  loop: start=0, step=1, limit=4
  $region2: #{total_net_forward.1} parent=0 // loop_pre_header
    _
  $region3: #{total_net_forward.1} parent=0 // loop_header
    %s14 = sphi 0, %s18
    %p15 = scmp.ge.s32.totalorder %s14, 4
    %s24 = sphi 0, %s26
    %s27 = sphi 0, %s24
    %s28 = sphi 0, %s27
    %s44 = sphi 0, %s28
    %s48 = sphi 0, %s48
    %s50 = sphi 0, %s48
    %s51 = sphi 0, %s50
    %s65 = sphi 0, %s51
    %s69 = sphi 0, %s69
    %s71 = sphi 0, %s69
    %s72 = sphi 0, %s71
    %s86 = sphi 0, %s72
    %s90 = sphi 0, %s90
    %s92 = sphi 0, %s90
    %s93 = sphi 0, %s92
    %s107 = sphi 0, %s93
    %s111 = sphi 0, %s111
    %s113 = sphi 0, %s111
    %s114 = sphi 0, %s113
    %s128 = sphi 0, %s114
    %s132 = sphi 0, %s132
    %s134 = sphi 0, %s132
    %s135 = sphi 0, %s134
    %s149 = sphi 0, %s135
    %s153 = sphi 0, %s153
    %s155 = sphi 0, %s153
    %s156 = sphi 0, %s155
    %s170 = sphi 0, %s156
    %s174 = sphi 0, %s174
    %s176 = sphi 0, %s174
    %s177 = sphi 0, %s176
    %s191 = sphi 0, %s177
    %s197 = sphi 0, %s199
    %s200 = sphi 0, %s197
    %s201 = sphi 0, %s200
    %s217 = sphi 0, %s201
  $region4: #{total_net_forward.1} parent=0 // loop_header_branch
    %17 = sbr.rel (%p15) target = $region8
  $region5: #{total_net_forward.1} parent=0 // loop_body
    %s19 = ssub.s32 %s14, 1
    %s20 = ssub.s32 %s14, 2
    %s21 = sadd.s32 %s14, 1
    %s22 = ssub.s32 %s14, %s21
    %p23 = scmp.eq.s32.totalorder %s22, 0
    %s25 = sadd.s32 %s24, 1
    %s26 = scalar_select %p23, %s24, %s25
    %p29 = pneg %p23
    %p30 = scmp.eq.s32.totalorder %s14, 1
    %p31 = por %p29, %p30
    %p32 = scmp.ne.s32.totalorder %s24, %s27
    %p33 = scmp.eq.s32.totalorder %s14, 0
    %p34 = por %p32, %p33
    %p35 = scmp.ne.s32.totalorder %s24, %s27
    %p36 = scmp.eq.s32.totalorder %s19, 1
    %p37 = por %p35, %p36
    %p38 = scmp.ne.s32.totalorder %s27, %s28
    %p39 = scmp.eq.s32.totalorder %s19, 0
    %p40 = por %p38, %p39
    %p41 = scmp.ne.s32.totalorder %s27, %s28
    %p42 = scmp.eq.s32.totalorder %s20, 1
    %p43 = por %p41, %p42
    %p45 = scmp.ne.s32.totalorder %s28, %s44
    %p46 = scmp.eq.s32.totalorder %s20, 0
    %p47 = por %p45, %p46
    %s49 = sadd.s32 %s48, 1
    %p52 = scmp.eq.s32.totalorder %s14, 1
    %p53 = scmp.ne.s32.totalorder %s48, %s50
    %p54 = scmp.eq.s32.totalorder %s14, 0
    %p55 = por %p53, %p54
    %p56 = scmp.ne.s32.totalorder %s48, %s50
    %p57 = scmp.eq.s32.totalorder %s19, 1
    %p58 = por %p56, %p57
    %p59 = scmp.ne.s32.totalorder %s50, %s51
    %p60 = scmp.eq.s32.totalorder %s19, 0
    %p61 = por %p59, %p60
    %p62 = scmp.ne.s32.totalorder %s50, %s51
    %p63 = scmp.eq.s32.totalorder %s20, 1
    %p64 = por %p62, %p63
    %p66 = scmp.ne.s32.totalorder %s51, %s65
    %p67 = scmp.eq.s32.totalorder %s20, 0
    %p68 = por %p66, %p67
    %s70 = sadd.s32 %s69, 1
    %p73 = scmp.eq.s32.totalorder %s14, 1
    %p74 = scmp.ne.s32.totalorder %s69, %s71
    %p75 = scmp.eq.s32.totalorder %s14, 0
    %p76 = por %p74, %p75
    %p77 = scmp.ne.s32.totalorder %s69, %s71
    %p78 = scmp.eq.s32.totalorder %s19, 1
    %p79 = por %p77, %p78
    %p80 = scmp.ne.s32.totalorder %s71, %s72
    %p81 = scmp.eq.s32.totalorder %s19, 0
    %p82 = por %p80, %p81
    %p83 = scmp.ne.s32.totalorder %s71, %s72
    %p84 = scmp.eq.s32.totalorder %s20, 1
    %p85 = por %p83, %p84
    %p87 = scmp.ne.s32.totalorder %s72, %s86
    %p88 = scmp.eq.s32.totalorder %s20, 0
    %p89 = por %p87, %p88
    %s91 = sadd.s32 %s90, 1
    %p94 = scmp.eq.s32.totalorder %s14, 1
    %p95 = scmp.ne.s32.totalorder %s90, %s92
    %p96 = scmp.eq.s32.totalorder %s14, 0
    %p97 = por %p95, %p96
    %p98 = scmp.ne.s32.totalorder %s90, %s92
    %p99 = scmp.eq.s32.totalorder %s19, 1
    %p100 = por %p98, %p99
    %p101 = scmp.ne.s32.totalorder %s92, %s93
    %p102 = scmp.eq.s32.totalorder %s19, 0
    %p103 = por %p101, %p102
    %p104 = scmp.ne.s32.totalorder %s92, %s93
    %p105 = scmp.eq.s32.totalorder %s20, 1
    %p106 = por %p104, %p105
    %p108 = scmp.ne.s32.totalorder %s93, %s107
    %p109 = scmp.eq.s32.totalorder %s20, 0
    %p110 = por %p108, %p109
    %s112 = sadd.s32 %s111, 1
    %p115 = scmp.eq.s32.totalorder %s14, 1
    %p116 = scmp.ne.s32.totalorder %s111, %s113
    %p117 = scmp.eq.s32.totalorder %s14, 0
    %p118 = por %p116, %p117
    %p119 = scmp.ne.s32.totalorder %s111, %s113
    %p120 = scmp.eq.s32.totalorder %s19, 1
    %p121 = por %p119, %p120
    %p122 = scmp.ne.s32.totalorder %s113, %s114
    %p123 = scmp.eq.s32.totalorder %s19, 0
    %p124 = por %p122, %p123
    %p125 = scmp.ne.s32.totalorder %s113, %s114
    %p126 = scmp.eq.s32.totalorder %s20, 1
    %p127 = por %p125, %p126
    %p129 = scmp.ne.s32.totalorder %s114, %s128
    %p130 = scmp.eq.s32.totalorder %s20, 0
    %p131 = por %p129, %p130
    %s133 = sadd.s32 %s132, 1
    %p136 = scmp.eq.s32.totalorder %s14, 1
    %p137 = scmp.ne.s32.totalorder %s132, %s134
    %p138 = scmp.eq.s32.totalorder %s14, 0
    %p139 = por %p137, %p138
    %p140 = scmp.ne.s32.totalorder %s132, %s134
    %p141 = scmp.eq.s32.totalorder %s19, 1
    %p142 = por %p140, %p141
    %p143 = scmp.ne.s32.totalorder %s134, %s135
    %p144 = scmp.eq.s32.totalorder %s19, 0
    %p145 = por %p143, %p144
    %p146 = scmp.ne.s32.totalorder %s134, %s135
    %p147 = scmp.eq.s32.totalorder %s20, 1
    %p148 = por %p146, %p147
    %p150 = scmp.ne.s32.totalorder %s135, %s149
    %p151 = scmp.eq.s32.totalorder %s20, 0
    %p152 = por %p150, %p151
    %s154 = sadd.s32 %s153, 1
    %p157 = scmp.eq.s32.totalorder %s14, 1
    %p158 = scmp.ne.s32.totalorder %s153, %s155
    %p159 = scmp.eq.s32.totalorder %s14, 0
    %p160 = por %p158, %p159
    %p161 = scmp.ne.s32.totalorder %s153, %s155
    %p162 = scmp.eq.s32.totalorder %s19, 1
    %p163 = por %p161, %p162
    %p164 = scmp.ne.s32.totalorder %s155, %s156
    %p165 = scmp.eq.s32.totalorder %s19, 0
    %p166 = por %p164, %p165
    %p167 = scmp.ne.s32.totalorder %s155, %s156
    %p168 = scmp.eq.s32.totalorder %s20, 1
    %p169 = por %p167, %p168
    %p171 = scmp.ne.s32.totalorder %s156, %s170
    %p172 = scmp.eq.s32.totalorder %s20, 0
    %p173 = por %p171, %p172
    %s175 = sadd.s32 %s174, 1
    %p178 = scmp.eq.s32.totalorder %s14, 1
    %p179 = scmp.ne.s32.totalorder %s174, %s176
    %p180 = scmp.eq.s32.totalorder %s14, 0
    %p181 = por %p179, %p180
    %p182 = scmp.ne.s32.totalorder %s174, %s176
    %p183 = scmp.eq.s32.totalorder %s19, 1
    %p184 = por %p182, %p183
    %p185 = scmp.ne.s32.totalorder %s176, %s177
    %p186 = scmp.eq.s32.totalorder %s19, 0
    %p187 = por %p185, %p186
    %p188 = scmp.ne.s32.totalorder %s176, %s177
    %p189 = scmp.eq.s32.totalorder %s20, 1
    %p190 = por %p188, %p189
    %p192 = scmp.ne.s32.totalorder %s177, %s191
    %p193 = scmp.eq.s32.totalorder %s20, 0
    %p194 = por %p192, %p193
    %s195 = ssub.s32 %s14, %s21
    %p196 = scmp.eq.s32.totalorder %s195, 0
    %s198 = sadd.s32 %s197, 1
    %s199 = scalar_select %p196, %s197, %s198
    %p202 = pneg %p196
    %p203 = scmp.eq.s32.totalorder %s14, 1
    %p204 = por %p202, %p203
    %p205 = scmp.ne.s32.totalorder %s197, %s200
    %p206 = scmp.eq.s32.totalorder %s14, 0
    %p207 = por %p205, %p206
    %p208 = scmp.ne.s32.totalorder %s197, %s200
    %p209 = scmp.eq.s32.totalorder %s19, 1
    %p210 = por %p208, %p209
    %p211 = scmp.ne.s32.totalorder %s200, %s201
    %p212 = scmp.eq.s32.totalorder %s19, 0
    %p213 = por %p211, %p212
    %p214 = scmp.ne.s32.totalorder %s200, %s201
    %p215 = scmp.eq.s32.totalorder %s20, 1
    %p216 = por %p214, %p215
    %p218 = scmp.ne.s32.totalorder %s201, %s217
    %p219 = scmp.eq.s32.totalorder %s20, 0
    %p220 = por %p218, %p219
    %p221 = scmp.le.s32.totalorder 1, %s14
    %p222 = scmp.lt.s32.totalorder %s14, 3
    %p223 = pnand %p221, %p222
    %p224 = pneg %p223
    // Predicated region
    $region9: #{total_net_forward.1} parent=5 // pred_check
      _
    $region10: #{total_net_forward.1} parent=5 // pred_check_branch
      %226 = sbr.rel (%p223) target = $region12
    $region11: #{total_net_forward.1} parent=5 // pred_region
      %s227 = ssub.s32 %s14, 1
      // Predicated region
      $region13: #{total_net_forward.1} parent=11 // pred_check
        %p228 = pneg %p61
      $region14: #{total_net_forward.1} parent=11 // pred_check_branch
        %230 = sbr.rel (%p228) target = $region16
      $region15: #{total_net_forward.1} parent=11 // pred_region
        _
      $region16: #{total_net_forward.1} parent=11 // pred_fallthru
        _
      // Predicated region
      $region17: #{total_net_forward.1} parent=11 // pred_check
        %p231 = pneg %p82
      $region18: #{total_net_forward.1} parent=11 // pred_check_branch
        %233 = sbr.rel (%p231) target = $region20
      $region19: #{total_net_forward.1} parent=11 // pred_region
        _
      $region20: #{total_net_forward.1} parent=11 // pred_fallthru
        _
      // Predicated region
      $region21: #{total_net_forward.1} parent=11 // pred_check
        %p234 = pneg %p103
      $region22: #{total_net_forward.1} parent=11 // pred_check_branch
        %236 = sbr.rel (%p234) target = $region24
      $region23: #{total_net_forward.1} parent=11 // pred_region
        _
      $region24: #{total_net_forward.1} parent=11 // pred_fallthru
        _
      // Predicated region
      $region25: #{total_net_forward.1} parent=11 // pred_check
        %p237 = pneg %p124
      $region26: #{total_net_forward.1} parent=11 // pred_check_branch
        %239 = sbr.rel (%p237) target = $region28
      $region27: #{total_net_forward.1} parent=11 // pred_region
        _
      $region28: #{total_net_forward.1} parent=11 // pred_fallthru
        _
      // Predicated region
      $region29: #{total_net_forward.1} parent=11 // pred_check
        %p240 = pneg %p145
      $region30: #{total_net_forward.1} parent=11 // pred_check_branch
        %242 = sbr.rel (%p240) target = $region32
      $region31: #{total_net_forward.1} parent=11 // pred_region
        _
      $region32: #{total_net_forward.1} parent=11 // pred_fallthru
        _
      // Predicated region
      $region33: #{total_net_forward.1} parent=11 // pred_check
        %p243 = pneg %p166
      $region34: #{total_net_forward.1} parent=11 // pred_check_branch
        %245 = sbr.rel (%p243) target = $region36
      $region35: #{total_net_forward.1} parent=11 // pred_region
        _
      $region36: #{total_net_forward.1} parent=11 // pred_fallthru
        _
      // Predicated region
      $region37: #{total_net_forward.1} parent=11 // pred_check
        %p246 = pneg %p187
      $region38: #{total_net_forward.1} parent=11 // pred_check_branch
        %248 = sbr.rel (%p246) target = $region40
      $region39: #{total_net_forward.1} parent=11 // pred_region
        _
      $region40: #{total_net_forward.1} parent=11 // pred_fallthru
        _
    $region12: #{total_net_forward.1} parent=5 // pred_fallthru
      _
    %p249 = scmp.lt.s32.totalorder %s14, 2
    // Predicated region
    $region41: #{total_net_forward.1} parent=5 // pred_check
      %p250 = pneg %p249
    $region42: #{total_net_forward.1} parent=5 // pred_check_branch
      %252 = sbr.rel (%p250) target = $region44
    $region43: #{total_net_forward.1} parent=5 // pred_region
      // Predicated region
      $region45: #{total_net_forward.1} parent=43 // pred_check
        %p253 = pneg %p34
      $region46: #{total_net_forward.1} parent=43 // pred_check_branch
        %255 = sbr.rel (%p253) target = $region48
      $region47: #{total_net_forward.1} parent=43 // pred_region
        %p256 = scmp.lt.s32.totalorder %s14, 1
        %s257 = scalar_select %p256, %s14, 1
        %s258 = smul.addr %s257, 32
        %s259 = smul.addr %s258, 4
        %s260 = scalar_lea.vmem %s0, %s259
      $region48: #{total_net_forward.1} parent=43 // pred_fallthru
        _
    $region44: #{total_net_forward.1} parent=5 // pred_fallthru
      _
    %p261 = scmp.le.s32.totalorder 1, %s14
    %p262 = scmp.lt.s32.totalorder %s14, 3
    %p263 = pnand %p261, %p262
    %p264 = pneg %p263
    // Predicated region
    $region49: #{total_net_forward.1} parent=5 // pred_check
      _
    $region50: #{total_net_forward.1} parent=5 // pred_check_branch
      %266 = sbr.rel (%p263) target = $region52
    $region51: #{total_net_forward.1} parent=5 // pred_region
      %s267 = ssub.s32 %s14, 1
      %p268 = scmp.lt.s32.totalorder %s19, 1
      %s269 = scalar_select %p268, %s19, 1
      %s270 = smul.addr %s269, 32
      %s271 = smul.addr %s270, 4
      %s272 = scalar_lea.vmem %s0, %s271
      %p273 = pneg %p40
      %p274 = pneg %p37
      %p275 = pneg %p61
      %p276 = pneg %p58
      %p277 = pneg %p82
      %p278 = pneg %p79
      %p279 = pneg %p103
      %p280 = pneg %p100
      %p281 = pneg %p124
      %p282 = pneg %p121
      %p283 = pneg %p145
      %p284 = pneg %p142
      %p285 = pneg %p166
      %p286 = pneg %p163
      %p287 = pneg %p187
      %p288 = pneg %p184
      %p289 = pneg %p213
      %p290 = pneg %p210
      %p291 = scmp.lt.s32.totalorder %s19, 1
      %s292 = scalar_select %p291, %s19, 1
      %s293 = smul.addr %s292, 8
      %s294 = scalar_lea.vmem %s8, %s293
      %p295 = scmp.lt.s32.totalorder %s19, 1
      %s296 = scalar_select %p295, %s19, 1
      %s297 = smul.addr %s296, 32
      %s298 = smul.addr %s297, 4
      %s299 = scalar_lea.vmem %s0, %s298
      %p300 = scmp.lt.s32.totalorder %s19, 1
      %s301 = scalar_select %p300, %s19, 1
      %s302 = smul.addr %s301, 8
      %s303 = scalar_lea.vmem %s8, %s302
      %v305 = vld [vmem:[%s299] sm:$0xf]
      %v306 = vld [vmem:[%s299 + $0x4] sm:$0xf]
      %v307 = vld [vmem:[%s299 + $0x8] sm:$0xf]
      %v308 = vld [vmem:[%s299 + $0xc] sm:$0xf]
      %v309 = vld [vmem:[%s299 + $0x10] sm:$0xf]
      %v310 = vld [vmem:[%s299 + $0x14] sm:$0xf]
      %v311 = vld [vmem:[%s299 + $0x18] sm:$0xf]
      %v312 = vld [vmem:[%s299 + $0x1c] sm:$0xf]
      %v313 = vld [vmem:[%s299 + $0x20] sm:$0xf]
      %v314 = vld [vmem:[%s299 + $0x24] sm:$0xf]
      %v315 = vld [vmem:[%s299 + $0x28] sm:$0xf]
      %v316 = vld [vmem:[%s299 + $0x2c] sm:$0xf]
      %v317 = vld [vmem:[%s299 + $0x30] sm:$0xf]
      %v318 = vld [vmem:[%s299 + $0x34] sm:$0xf]
      %v319 = vld [vmem:[%s299 + $0x38] sm:$0xf]
      %v320 = vld [vmem:[%s299 + $0x3c] sm:$0xf]
      %v321 = vld [vmem:[%s299 + $0x40] sm:$0xf]
      %v322 = vld [vmem:[%s299 + $0x44] sm:$0xf]
      %v323 = vld [vmem:[%s299 + $0x48] sm:$0xf]
      %v324 = vld [vmem:[%s299 + $0x4c] sm:$0xf]
      %v325 = vld [vmem:[%s299 + $0x50] sm:$0xf]
      %v326 = vld [vmem:[%s299 + $0x54] sm:$0xf]
      %v327 = vld [vmem:[%s299 + $0x58] sm:$0xf]
      %v328 = vld [vmem:[%s299 + $0x5c] sm:$0xf]
      %v329 = vld [vmem:[%s299 + $0x60] sm:$0xf]
      %v330 = vld [vmem:[%s299 + $0x64] sm:$0xf]
      %v331 = vld [vmem:[%s299 + $0x68] sm:$0xf]
      %v332 = vld [vmem:[%s299 + $0x6c] sm:$0xf]
      %v333 = vld [vmem:[%s299 + $0x70] sm:$0xf]
      %v334 = vld [vmem:[%s299 + $0x74] sm:$0xf]
      %v335 = vld [vmem:[%s299 + $0x78] sm:$0xf]
      %v336 = vld [vmem:[%s299 + $0x7c] sm:$0xf]
      %v337 = vld [vmem:[%s1] sm:$0xf]
      %v338 = vld [vmem:[%s1 + $0x4] sm:$0xf]
      %v339 = vld [vmem:[%s1 + $0x8] sm:$0xf]
      %v340 = vld [vmem:[%s1 + $0xc] sm:$0xf]
      %v341 = vld [vmem:[%s1 + $0x10] sm:$0xf]
      %v342 = vld [vmem:[%s1 + $0x14] sm:$0xf]
      %v343 = vld [vmem:[%s1 + $0x18] sm:$0xf]
      %v344 = vld [vmem:[%s1 + $0x1c] sm:$0xf]
      %v345 = vld [vmem:[%s1 + $0x20] sm:$0xf]
      %v346 = vld [vmem:[%s1 + $0x24] sm:$0xf]
      %v347 = vld [vmem:[%s1 + $0x28] sm:$0xf]
      %v348 = vld [vmem:[%s1 + $0x2c] sm:$0xf]
      %v349 = vld [vmem:[%s1 + $0x30] sm:$0xf]
      %v350 = vld [vmem:[%s1 + $0x34] sm:$0xf]
      %v351 = vld [vmem:[%s1 + $0x38] sm:$0xf]
      %v352 = vld [vmem:[%s1 + $0x3c] sm:$0xf]
      %v353 = vld [vmem:[%s2] sm:$0x1]
      %v355 = vlaneseq
      %v356 = vshrl.u32 %v355, 7
      %v357 = vsub.s32 0, %v356
      %v358 = vrot.slane %v353, %v357
      %v392 = vunpack.c.l.b16 %v305
      %v393 = vunpack.c.l.b16 %v306
      %v394 = vunpack.c.l.b16 %v307
      %v395 = vunpack.c.l.b16 %v308
      %v396 = vunpack.c.l.b16 %v309
      %v397 = vunpack.c.l.b16 %v310
      %v398 = vunpack.c.l.b16 %v311
      %v399 = vunpack.c.l.b16 %v312
      %v400 = vunpack.c.l.b16 %v313
      %v401 = vunpack.c.l.b16 %v314
      %v402 = vunpack.c.l.b16 %v315
      %v403 = vunpack.c.l.b16 %v316
      %v404 = vunpack.c.l.b16 %v317
      %v405 = vunpack.c.l.b16 %v318
      %v406 = vunpack.c.l.b16 %v319
      %v407 = vunpack.c.l.b16 %v320
      %v408 = vunpack.c.l.b16 %v321
      %v409 = vunpack.c.l.b16 %v322
      %v410 = vunpack.c.l.b16 %v323
      %v411 = vunpack.c.l.b16 %v324
      %v412 = vunpack.c.l.b16 %v325
      %v413 = vunpack.c.l.b16 %v326
      %v414 = vunpack.c.l.b16 %v327
      %v415 = vunpack.c.l.b16 %v328
      %v416 = vunpack.c.l.b16 %v329
      %v417 = vunpack.c.l.b16 %v330
      %v418 = vunpack.c.l.b16 %v331
      %v419 = vunpack.c.l.b16 %v332
      %v420 = vunpack.c.l.b16 %v333
      %v421 = vunpack.c.l.b16 %v334
      %v422 = vunpack.c.l.b16 %v335
      %v423 = vunpack.c.l.b16 %v336
      %v424 = vpack.c.b16 %v393, %v392
      %v425 = vpack.c.b16 %v395, %v394
      %v426 = vpack.c.b16 %v397, %v396
      %v427 = vpack.c.b16 %v399, %v398
      %v428 = vpack.c.b16 %v401, %v400
      %v429 = vpack.c.b16 %v403, %v402
      %v430 = vpack.c.b16 %v405, %v404
      %v431 = vpack.c.b16 %v407, %v406
      %v432 = vpack.c.b16 %v409, %v408
      %v433 = vpack.c.b16 %v411, %v410
      %v434 = vpack.c.b16 %v413, %v412
      %v435 = vpack.c.b16 %v415, %v414
      %v436 = vpack.c.b16 %v417, %v416
      %v437 = vpack.c.b16 %v419, %v418
      %v438 = vpack.c.b16 %v421, %v420
      %v439 = vpack.c.b16 %v423, %v422
      %v472 = vunpack.c.l.b16 %v337
      %v473 = vunpack.c.l.b16 %v338
      %v474 = vunpack.c.l.b16 %v339
      %v475 = vunpack.c.l.b16 %v340
      %v476 = vunpack.c.l.b16 %v341
      %v477 = vunpack.c.l.b16 %v342
      %v478 = vunpack.c.l.b16 %v343
      %v479 = vunpack.c.l.b16 %v344
      %v480 = vunpack.c.l.b16 %v345
      %v481 = vunpack.c.l.b16 %v346
      %v482 = vunpack.c.l.b16 %v347
      %v483 = vunpack.c.l.b16 %v348
      %v484 = vunpack.c.l.b16 %v349
      %v485 = vunpack.c.l.b16 %v350
      %v486 = vunpack.c.l.b16 %v351
      %v487 = vunpack.c.l.b16 %v352
      %v488 = vpack.c.b16 %v473, %v472
      %v489 = vpack.c.b16 %v475, %v474
      %v490 = vpack.c.b16 %v477, %v476
      %v491 = vpack.c.b16 %v479, %v478
      %v492 = vpack.c.b16 %v481, %v480
      %v493 = vpack.c.b16 %v483, %v482
      %v494 = vpack.c.b16 %v485, %v484
      %v495 = vpack.c.b16 %v487, %v486
      %504 = vmatprep.subr.bf16.mxu0 0
      %505 = vmatpush1.bf16.msra.mxu0 %v488
      %506 = vmatprep.subr.bf16.mxu0 0
      %507 = vmatpush1.bf16.msra.mxu0 %v489
      %508 = vmatprep.subr.bf16.mxu0 0
      %509 = vmatpush1.bf16.msra.mxu0 %v490
      %510 = vmatprep.subr.bf16.mxu0 0
      %511 = vmatpush1.bf16.msra.mxu0 %v491
      %512 = vmatprep.subr.bf16.mxu0 0
      %513 = vmatpush1.bf16.msra.mxu0 %v492
      %514 = vmatprep.subr.bf16.mxu0 0
      %515 = vmatpush1.bf16.msra.mxu0 %v493
      %516 = vmatprep.subr.bf16.mxu0 0
      %517 = vmatpush1.bf16.msra.mxu0 %v494
      %518 = vmatprep.subr.bf16.mxu0 0
      %519 = vmatpush1.bf16.msra.mxu0 %v495
      %520 = vmatprep.subr.bf16.mxu0 0
      %521 = vmatpush1.bf16.msra.mxu0 0
      %522 = vmatprep.subr.bf16.mxu0 0
      %523 = vmatpush1.bf16.msra.mxu0 0
      %524 = vmatprep.subr.bf16.mxu0 0
      %525 = vmatpush1.bf16.msra.mxu0 0
      %526 = vmatprep.subr.bf16.mxu0 0
      %527 = vmatpush1.bf16.msra.mxu0 0
      %528 = vmatprep.subr.bf16.mxu0 0
      %529 = vmatpush1.bf16.msra.mxu0 0
      %530 = vmatprep.subr.bf16.mxu0 0
      %531 = vmatpush1.bf16.msra.mxu0 0
      %532 = vmatprep.subr.bf16.mxu0 0
      %533 = vmatpush1.bf16.msra.mxu0 0
      %534 = vmatprep.subr.bf16.mxu0 0
      %535 = vmatpush1.bf16.msra.mxu0 0
      %536 = vmatprep.mubr.bf16.mxu0 0
      %537 = vmatmul.mubr.bf16.gmra.mrb[0].mxu0 %v424
      %v538 = vpop.f32.mrb[0].mxu0
      %v539 = vadd.f32 %v358, %v538
      %v540 = vpop.f32.mrb[0].mxu0
      %v541 = vpop.f32.mrb[0].mxu0
      %v542 = vadd.f32 %v358, %v541
      %v543 = vpop.f32.mrb[0].mxu0
      %544 = vmatprep.mubr.bf16.mxu0 0
      %545 = vmatmul.mubr.bf16.gmra.mrb[0].mxu0 %v425
      %v546 = vpop.f32.mrb[0].mxu0
      %v547 = vadd.f32 %v358, %v546
      %v548 = vpop.f32.mrb[0].mxu0
      %v549 = vpop.f32.mrb[0].mxu0
      %v550 = vadd.f32 %v358, %v549
      %v551 = vpop.f32.mrb[0].mxu0
      %552 = vmatprep.mubr.bf16.mxu0 0
      %553 = vmatmul.mubr.bf16.gmra.mrb[0].mxu0 %v426
      %v554 = vpop.f32.mrb[0].mxu0
      %v555 = vadd.f32 %v358, %v554
      %v556 = vpop.f32.mrb[0].mxu0
      %v557 = vpop.f32.mrb[0].mxu0
      %v558 = vadd.f32 %v358, %v557
      %v559 = vpop.f32.mrb[0].mxu0
      %560 = vmatprep.mubr.bf16.mxu0 0
      %561 = vmatmul.mubr.bf16.gmra.mrb[0].mxu0 %v427
      %v562 = vpop.f32.mrb[0].mxu0
      %v563 = vadd.f32 %v358, %v562
      %v564 = vpop.f32.mrb[0].mxu0
      %v565 = vpop.f32.mrb[0].mxu0
      %v566 = vadd.f32 %v358, %v565
      %v567 = vpop.f32.mrb[0].mxu0
      %568 = vmatprep.mubr.bf16.mxu0 0
      %569 = vmatmul.mubr.bf16.gmra.mrb[0].mxu0 %v428
      %v570 = vpop.f32.mrb[0].mxu0
      %v571 = vadd.f32 %v358, %v570
      %v572 = vpop.f32.mrb[0].mxu0
      %v573 = vpop.f32.mrb[0].mxu0
      %v574 = vadd.f32 %v358, %v573
      %v575 = vpop.f32.mrb[0].mxu0
      %576 = vmatprep.mubr.bf16.mxu0 0
      %577 = vmatmul.mubr.bf16.gmra.mrb[0].mxu0 %v429
      %v578 = vpop.f32.mrb[0].mxu0
      %v579 = vadd.f32 %v358, %v578
      %v580 = vpop.f32.mrb[0].mxu0
      %v581 = vpop.f32.mrb[0].mxu0
      %v582 = vadd.f32 %v358, %v581
      %v583 = vpop.f32.mrb[0].mxu0
      %584 = vmatprep.mubr.bf16.mxu0 0
      %585 = vmatmul.mubr.bf16.gmra.mrb[0].mxu0 %v430
      %v586 = vpop.f32.mrb[0].mxu0
      %v587 = vadd.f32 %v358, %v586
      %v588 = vpop.f32.mrb[0].mxu0
      %v589 = vpop.f32.mrb[0].mxu0
      %v590 = vadd.f32 %v358, %v589
      %v591 = vpop.f32.mrb[0].mxu0
      %592 = vmatprep.mubr.bf16.mxu0 0
      %593 = vmatmul.mubr.bf16.gmra.mrb[0].mxu0 %v431
      %v594 = vpop.f32.mrb[0].mxu0
      %v595 = vadd.f32 %v358, %v594
      %v596 = vpop.f32.mrb[0].mxu0
      %v597 = vpop.f32.mrb[0].mxu0
      %v598 = vadd.f32 %v358, %v597
      %v599 = vpop.f32.mrb[0].mxu0
      %600 = vmatprep.mubr.bf16.mxu0 0
      %601 = vmatmul.mubr.bf16.gmra.mrb[0].mxu0 %v432
      %v602 = vpop.f32.mrb[0].mxu0
      %v603 = vadd.f32 %v358, %v602
      %v604 = vpop.f32.mrb[0].mxu0
      %v605 = vpop.f32.mrb[0].mxu0
      %v606 = vadd.f32 %v358, %v605
      %v607 = vpop.f32.mrb[0].mxu0
      %608 = vmatprep.mubr.bf16.mxu0 0
      %609 = vmatmul.mubr.bf16.gmra.mrb[0].mxu0 %v433
      %v610 = vpop.f32.mrb[0].mxu0
      %v611 = vadd.f32 %v358, %v610
      %v612 = vpop.f32.mrb[0].mxu0
      %v613 = vpop.f32.mrb[0].mxu0
      %v614 = vadd.f32 %v358, %v613
      %v615 = vpop.f32.mrb[0].mxu0
      %616 = vmatprep.mubr.bf16.mxu0 0
      %617 = vmatmul.mubr.bf16.gmra.mrb[0].mxu0 %v434
      %v618 = vpop.f32.mrb[0].mxu0
      %v619 = vadd.f32 %v358, %v618
      %v620 = vpop.f32.mrb[0].mxu0
      %v621 = vpop.f32.mrb[0].mxu0
      %v622 = vadd.f32 %v358, %v621
      %v623 = vpop.f32.mrb[0].mxu0
      %624 = vmatprep.mubr.bf16.mxu0 0
      %625 = vmatmul.mubr.bf16.gmra.mrb[0].mxu0 %v435
      %v626 = vpop.f32.mrb[0].mxu0
      %v627 = vadd.f32 %v358, %v626
      %v628 = vpop.f32.mrb[0].mxu0
      %v629 = vpop.f32.mrb[0].mxu0
      %v630 = vadd.f32 %v358, %v629
      %v631 = vpop.f32.mrb[0].mxu0
      %632 = vmatprep.mubr.bf16.mxu0 0
      %633 = vmatmul.mubr.bf16.gmra.mrb[0].mxu0 %v436
      %v634 = vpop.f32.mrb[0].mxu0
      %v635 = vadd.f32 %v358, %v634
      %v636 = vpop.f32.mrb[0].mxu0
      %v637 = vpop.f32.mrb[0].mxu0
      %v638 = vadd.f32 %v358, %v637
      %v639 = vpop.f32.mrb[0].mxu0
      %640 = vmatprep.mubr.bf16.mxu0 0
      %641 = vmatmul.mubr.bf16.gmra.mrb[0].mxu0 %v437
      %v642 = vpop.f32.mrb[0].mxu0
      %v643 = vadd.f32 %v358, %v642
      %v644 = vpop.f32.mrb[0].mxu0
      %v645 = vpop.f32.mrb[0].mxu0
      %v646 = vadd.f32 %v358, %v645
      %v647 = vpop.f32.mrb[0].mxu0
      %648 = vmatprep.mubr.bf16.mxu0 0
      %649 = vmatmul.mubr.bf16.gmra.mrb[0].mxu0 %v438
      %v650 = vpop.f32.mrb[0].mxu0
      %v651 = vadd.f32 %v358, %v650
      %v652 = vpop.f32.mrb[0].mxu0
      %v653 = vpop.f32.mrb[0].mxu0
      %v654 = vadd.f32 %v358, %v653
      %v655 = vpop.f32.mrb[0].mxu0
      %656 = vmatprep.mubr.bf16.mxu0 0
      %657 = vmatmul.mubr.bf16.gmra.mrb[0].mxu0 %v439
      %v658 = vpop.f32.mrb[0].mxu0
      %v659 = vadd.f32 %v358, %v658
      %v660 = vpop.f32.mrb[0].mxu0
      %v661 = vpop.f32.mrb[0].mxu0
      %v662 = vadd.f32 %v358, %v661
      %v663 = vpop.f32.mrb[0].mxu0
      %664 = vdwg.mxu0
      %vm665 = vcmp.gt.f32.partialorder %v539, 0.0
      %vm666 = vcmp.gt.f32.partialorder %v542, 0.0
      %vm667 = vcmp.gt.f32.partialorder %v547, 0.0
      %vm668 = vcmp.gt.f32.partialorder %v550, 0.0
      %vm669 = vcmp.gt.f32.partialorder %v555, 0.0
      %vm670 = vcmp.gt.f32.partialorder %v558, 0.0
      %vm671 = vcmp.gt.f32.partialorder %v563, 0.0
      %vm672 = vcmp.gt.f32.partialorder %v566, 0.0
      %vm673 = vcmp.gt.f32.partialorder %v571, 0.0
      %vm674 = vcmp.gt.f32.partialorder %v574, 0.0
      %vm675 = vcmp.gt.f32.partialorder %v579, 0.0
      %vm676 = vcmp.gt.f32.partialorder %v582, 0.0
      %vm677 = vcmp.gt.f32.partialorder %v587, 0.0
      %vm678 = vcmp.gt.f32.partialorder %v590, 0.0
      %vm679 = vcmp.gt.f32.partialorder %v595, 0.0
      %vm680 = vcmp.gt.f32.partialorder %v598, 0.0
      %vm681 = vcmp.gt.f32.partialorder %v603, 0.0
      %vm682 = vcmp.gt.f32.partialorder %v606, 0.0
      %vm683 = vcmp.gt.f32.partialorder %v611, 0.0
      %vm684 = vcmp.gt.f32.partialorder %v614, 0.0
      %vm685 = vcmp.gt.f32.partialorder %v619, 0.0
      %vm686 = vcmp.gt.f32.partialorder %v622, 0.0
      %vm687 = vcmp.gt.f32.partialorder %v627, 0.0
      %vm688 = vcmp.gt.f32.partialorder %v630, 0.0
      %vm689 = vcmp.gt.f32.partialorder %v635, 0.0
      %vm690 = vcmp.gt.f32.partialorder %v638, 0.0
      %vm691 = vcmp.gt.f32.partialorder %v643, 0.0
      %vm692 = vcmp.gt.f32.partialorder %v646, 0.0
      %vm693 = vcmp.gt.f32.partialorder %v651, 0.0
      %vm694 = vcmp.gt.f32.partialorder %v654, 0.0
      %vm695 = vcmp.gt.f32.partialorder %v659, 0.0
      %vm696 = vcmp.gt.f32.partialorder %v662, 0.0
      %v697 = vmul.f32 %v539, 0.1
      %v698 = vmul.f32 %v542, 0.1
      %v699 = vmul.f32 %v547, 0.1
      %v700 = vmul.f32 %v550, 0.1
      %v701 = vmul.f32 %v555, 0.1
      %v702 = vmul.f32 %v558, 0.1
      %v703 = vmul.f32 %v563, 0.1
      %v704 = vmul.f32 %v566, 0.1
      %v705 = vmul.f32 %v571, 0.1
      %v706 = vmul.f32 %v574, 0.1
      %v707 = vmul.f32 %v579, 0.1
      %v708 = vmul.f32 %v582, 0.1
      %v709 = vmul.f32 %v587, 0.1
      %v710 = vmul.f32 %v590, 0.1
      %v711 = vmul.f32 %v595, 0.1
      %v712 = vmul.f32 %v598, 0.1
      %v713 = vmul.f32 %v603, 0.1
      %v714 = vmul.f32 %v606, 0.1
      %v715 = vmul.f32 %v611, 0.1
      %v716 = vmul.f32 %v614, 0.1
      %v717 = vmul.f32 %v619, 0.1
      %v718 = vmul.f32 %v622, 0.1
      %v719 = vmul.f32 %v627, 0.1
      %v720 = vmul.f32 %v630, 0.1
      %v721 = vmul.f32 %v635, 0.1
      %v722 = vmul.f32 %v638, 0.1
      %v723 = vmul.f32 %v643, 0.1
      %v724 = vmul.f32 %v646, 0.1
      %v725 = vmul.f32 %v651, 0.1
      %v726 = vmul.f32 %v654, 0.1
      %v727 = vmul.f32 %v659, 0.1
      %v728 = vmul.f32 %v662, 0.1
      %v729 = vsel %vm665, %v539, %v697
      %v730 = vsel %vm666, %v542, %v698
      %v731 = vsel %vm667, %v547, %v699
      %v732 = vsel %vm668, %v550, %v700
      %v733 = vsel %vm669, %v555, %v701
      %v734 = vsel %vm670, %v558, %v702
      %v735 = vsel %vm671, %v563, %v703
      %v736 = vsel %vm672, %v566, %v704
      %v737 = vsel %vm673, %v571, %v705
      %v738 = vsel %vm674, %v574, %v706
      %v739 = vsel %vm675, %v579, %v707
      %v740 = vsel %vm676, %v582, %v708
      %v741 = vsel %vm677, %v587, %v709
      %v742 = vsel %vm678, %v590, %v710
      %v743 = vsel %vm679, %v595, %v711
      %v744 = vsel %vm680, %v598, %v712
      %v745 = vsel %vm681, %v603, %v713
      %v746 = vsel %vm682, %v606, %v714
      %v747 = vsel %vm683, %v611, %v715
      %v748 = vsel %vm684, %v614, %v716
      %v749 = vsel %vm685, %v619, %v717
      %v750 = vsel %vm686, %v622, %v718
      %v751 = vsel %vm687, %v627, %v719
      %v752 = vsel %vm688, %v630, %v720
      %v753 = vsel %vm689, %v635, %v721
      %v754 = vsel %vm690, %v638, %v722
      %v755 = vsel %vm691, %v643, %v723
      %v756 = vsel %vm692, %v646, %v724
      %v757 = vsel %vm693, %v651, %v725
      %v758 = vsel %vm694, %v654, %v726
      %v759 = vsel %vm695, %v659, %v727
      %v760 = vsel %vm696, %v662, %v728
      %v761 = vpack.c.bf16 %v730, %v729
      %v762 = vpack.c.bf16 %v732, %v731
      %v763 = vpack.c.bf16 %v734, %v733
      %v764 = vpack.c.bf16 %v736, %v735
      %v765 = vpack.c.bf16 %v738, %v737
      %v766 = vpack.c.bf16 %v740, %v739
      %v767 = vpack.c.bf16 %v742, %v741
      %v768 = vpack.c.bf16 %v744, %v743
      %v769 = vpack.c.bf16 %v746, %v745
      %v770 = vpack.c.bf16 %v748, %v747
      %v771 = vpack.c.bf16 %v750, %v749
      %v772 = vpack.c.bf16 %v752, %v751
      %v773 = vpack.c.bf16 %v754, %v753
      %v774 = vpack.c.bf16 %v756, %v755
      %v775 = vpack.c.bf16 %v758, %v757
      %v776 = vpack.c.bf16 %v760, %v759
      %v777 = vld [vmem:[%s3] sm:$0xf]
      %v778 = vld [vmem:[%s3 + $0x4] sm:$0xf]
      %v779 = vld [vmem:[%s3 + $0x8] sm:$0xf]
      %v780 = vld [vmem:[%s3 + $0xc] sm:$0xf]
      %v781 = vld [vmem:[%s3 + $0x10] sm:$0xf]
      %v782 = vld [vmem:[%s3 + $0x14] sm:$0xf]
      %v783 = vld [vmem:[%s3 + $0x18] sm:$0xf]
      %v784 = vld [vmem:[%s3 + $0x1c] sm:$0xf]
      %v785 = vld [vmem:[%s3 + $0x20] sm:$0xf]
      %v786 = vld [vmem:[%s3 + $0x24] sm:$0xf]
      %v787 = vld [vmem:[%s3 + $0x28] sm:$0xf]
      %v788 = vld [vmem:[%s3 + $0x2c] sm:$0xf]
      %v789 = vld [vmem:[%s3 + $0x30] sm:$0xf]
      %v790 = vld [vmem:[%s3 + $0x34] sm:$0xf]
      %v791 = vld [vmem:[%s3 + $0x38] sm:$0xf]
      %v792 = vld [vmem:[%s3 + $0x3c] sm:$0xf]
      %v793 = vld [vmem:[%s3 + $0x40] sm:$0xf]
      %v794 = vld [vmem:[%s3 + $0x44] sm:$0xf]
      %v795 = vld [vmem:[%s3 + $0x48] sm:$0xf]
      %v796 = vld [vmem:[%s3 + $0x4c] sm:$0xf]
      %v797 = vld [vmem:[%s3 + $0x50] sm:$0xf]
      %v798 = vld [vmem:[%s3 + $0x54] sm:$0xf]
      %v799 = vld [vmem:[%s3 + $0x58] sm:$0xf]
      %v800 = vld [vmem:[%s3 + $0x5c] sm:$0xf]
      %v801 = vld [vmem:[%s3 + $0x60] sm:$0xf]
      %v802 = vld [vmem:[%s3 + $0x64] sm:$0xf]
      %v803 = vld [vmem:[%s3 + $0x68] sm:$0xf]
      %v804 = vld [vmem:[%s3 + $0x6c] sm:$0xf]
      %v805 = vld [vmem:[%s3 + $0x70] sm:$0xf]
      %v806 = vld [vmem:[%s3 + $0x74] sm:$0xf]
      %v807 = vld [vmem:[%s3 + $0x78] sm:$0xf]
      %v808 = vld [vmem:[%s3 + $0x7c] sm:$0xf]
      %v841 = vunpack.c.l.b16 %v777
      %v842 = vunpack.c.l.b16 %v778
      %v843 = vunpack.c.l.b16 %v779
      %v844 = vunpack.c.l.b16 %v780
      %v845 = vunpack.c.l.b16 %v781
      %v846 = vunpack.c.l.b16 %v782
      %v847 = vunpack.c.l.b16 %v783
      %v848 = vunpack.c.l.b16 %v784
      %v849 = vunpack.c.l.b16 %v785
      %v850 = vunpack.c.l.b16 %v786
      %v851 = vunpack.c.l.b16 %v787
      %v852 = vunpack.c.l.b16 %v788
      %v853 = vunpack.c.l.b16 %v789
      %v854 = vunpack.c.l.b16 %v790
      %v855 = vunpack.c.l.b16 %v791
      %v856 = vunpack.c.l.b16 %v792
      %v857 = vunpack.c.l.b16 %v793
      %v858 = vunpack.c.l.b16 %v794
      %v859 = vunpack.c.l.b16 %v795
      %v860 = vunpack.c.l.b16 %v796
      %v861 = vunpack.c.l.b16 %v797
      %v862 = vunpack.c.l.b16 %v798
      %v863 = vunpack.c.l.b16 %v799
      %v864 = vunpack.c.l.b16 %v800
      %v865 = vunpack.c.l.b16 %v801
      %v866 = vunpack.c.l.b16 %v802
      %v867 = vunpack.c.l.b16 %v803
      %v868 = vunpack.c.l.b16 %v804
      %v869 = vunpack.c.l.b16 %v805
      %v870 = vunpack.c.l.b16 %v806
      %v871 = vunpack.c.l.b16 %v807
      %v872 = vunpack.c.l.b16 %v808
      %v873 = vpack.c.b16 %v842, %v841
      %v874 = vpack.c.b16 %v844, %v843
      %v875 = vpack.c.b16 %v846, %v845
      %v876 = vpack.c.b16 %v848, %v847
      %v877 = vpack.c.b16 %v850, %v849
      %v878 = vpack.c.b16 %v852, %v851
      %v879 = vpack.c.b16 %v854, %v853
      %v880 = vpack.c.b16 %v856, %v855
      %v881 = vpack.c.b16 %v858, %v857
      %v882 = vpack.c.b16 %v860, %v859
      %v883 = vpack.c.b16 %v862, %v861
      %v884 = vpack.c.b16 %v864, %v863
      %v885 = vpack.c.b16 %v866, %v865
      %v886 = vpack.c.b16 %v868, %v867
      %v887 = vpack.c.b16 %v870, %v869
      %v888 = vpack.c.b16 %v872, %v871
      %v905 = vmul.bf16 %v761, %v873
      %v906 = vmul.bf16 %v762, %v874
      %v907 = vmul.bf16 %v763, %v875
      %v908 = vmul.bf16 %v764, %v876
      %v909 = vmul.bf16 %v765, %v877
      %v910 = vmul.bf16 %v766, %v878
      %v911 = vmul.bf16 %v767, %v879
      %v912 = vmul.bf16 %v768, %v880
      %v913 = vmul.bf16 %v769, %v881
      %v914 = vmul.bf16 %v770, %v882
      %v915 = vmul.bf16 %v771, %v883
      %v916 = vmul.bf16 %v772, %v884
      %v917 = vmul.bf16 %v773, %v885
      %v918 = vmul.bf16 %v774, %v886
      %v919 = vmul.bf16 %v775, %v887
      %v920 = vmul.bf16 %v776, %v888
      %v921 = vld [vmem:[%s4] sm:$0xf]
      %v922 = vld [vmem:[%s4 + $0x4] sm:$0xf]
      %v923 = vld [vmem:[%s4 + $0x8] sm:$0xf]
      %v924 = vld [vmem:[%s4 + $0xc] sm:$0xf]
      %v925 = vld [vmem:[%s4 + $0x10] sm:$0xf]
      %v926 = vld [vmem:[%s4 + $0x14] sm:$0xf]
      %v927 = vld [vmem:[%s4 + $0x18] sm:$0xf]
      %v928 = vld [vmem:[%s4 + $0x1c] sm:$0xf]
      %v929 = vld [vmem:[%s4 + $0x20] sm:$0xf]
      %v930 = vld [vmem:[%s4 + $0x24] sm:$0xf]
      %v931 = vld [vmem:[%s4 + $0x28] sm:$0xf]
      %v932 = vld [vmem:[%s4 + $0x2c] sm:$0xf]
      %v933 = vld [vmem:[%s4 + $0x30] sm:$0xf]
      %v934 = vld [vmem:[%s4 + $0x34] sm:$0xf]
      %v935 = vld [vmem:[%s4 + $0x38] sm:$0xf]
      %v936 = vld [vmem:[%s4 + $0x3c] sm:$0xf]
      %v937 = vld [vmem:[%s5] sm:$0x1]
      %v939 = vlaneseq
      %v940 = vshrl.u32 %v939, 7
      %v941 = vsub.s32 0, %v940
      %v942 = vrot.slane %v937, %v941
      %v960 = vunpack.c.l.b16 %v921
      %v961 = vunpack.c.l.b16 %v922
      %v962 = vunpack.c.l.b16 %v923
      %v963 = vunpack.c.l.b16 %v924
      %v964 = vunpack.c.l.b16 %v925
      %v965 = vunpack.c.l.b16 %v926
      %v966 = vunpack.c.l.b16 %v927
      %v967 = vunpack.c.l.b16 %v928
      %v968 = vunpack.c.l.b16 %v929
      %v969 = vunpack.c.l.b16 %v930
      %v970 = vunpack.c.l.b16 %v931
      %v971 = vunpack.c.l.b16 %v932
      %v972 = vunpack.c.l.b16 %v933
      %v973 = vunpack.c.l.b16 %v934
      %v974 = vunpack.c.l.b16 %v935
      %v975 = vunpack.c.l.b16 %v936
      %v976 = vpack.c.b16 %v961, %v960
      %v977 = vpack.c.b16 %v963, %v962
      %v978 = vpack.c.b16 %v965, %v964
      %v979 = vpack.c.b16 %v967, %v966
      %v980 = vpack.c.b16 %v969, %v968
      %v981 = vpack.c.b16 %v971, %v970
      %v982 = vpack.c.b16 %v973, %v972
      %v983 = vpack.c.b16 %v975, %v974
      %992 = vmatprep.subr.bf16.mxu0 0
      %993 = vmatpush1.bf16.msra.mxu0 %v976
      %994 = vmatprep.subr.bf16.mxu0 0
      %995 = vmatpush1.bf16.msra.mxu0 %v977
      %996 = vmatprep.subr.bf16.mxu0 0
      %997 = vmatpush1.bf16.msra.mxu0 %v978
      %998 = vmatprep.subr.bf16.mxu0 0
      %999 = vmatpush1.bf16.msra.mxu0 %v979
      %1000 = vmatprep.subr.bf16.mxu0 0
      %1001 = vmatpush1.bf16.msra.mxu0 %v980
      %1002 = vmatprep.subr.bf16.mxu0 0
      %1003 = vmatpush1.bf16.msra.mxu0 %v981
      %1004 = vmatprep.subr.bf16.mxu0 0
      %1005 = vmatpush1.bf16.msra.mxu0 %v982
      %1006 = vmatprep.subr.bf16.mxu0 0
      %1007 = vmatpush1.bf16.msra.mxu0 %v983
      %1008 = vmatprep.subr.bf16.mxu0 0
      %1009 = vmatpush1.bf16.msra.mxu0 0
      %1010 = vmatprep.subr.bf16.mxu0 0
      %1011 = vmatpush1.bf16.msra.mxu0 0
      %1012 = vmatprep.subr.bf16.mxu0 0
      %1013 = vmatpush1.bf16.msra.mxu0 0
      %1014 = vmatprep.subr.bf16.mxu0 0
      %1015 = vmatpush1.bf16.msra.mxu0 0
      %1016 = vmatprep.subr.bf16.mxu0 0
      %1017 = vmatpush1.bf16.msra.mxu0 0
      %1018 = vmatprep.subr.bf16.mxu0 0
      %1019 = vmatpush1.bf16.msra.mxu0 0
      %1020 = vmatprep.subr.bf16.mxu0 0
      %1021 = vmatpush1.bf16.msra.mxu0 0
      %1022 = vmatprep.subr.bf16.mxu0 0
      %1023 = vmatpush1.bf16.msra.mxu0 0
      %1024 = vmatprep.mubr.bf16.mxu0 0
      %1025 = vmatmul.mubr.bf16.gmra.mrb[0].mxu0 %v905
      %v1026 = vpop.f32.mrb[0].mxu0
      %v1027 = vadd.f32 %v942, %v1026
      %v1028 = vpop.f32.mrb[0].mxu0
      %v1029 = vpop.f32.mrb[0].mxu0
      %v1030 = vadd.f32 %v942, %v1029
      %v1031 = vpop.f32.mrb[0].mxu0
      %1032 = vmatprep.mubr.bf16.mxu0 0
      %1033 = vmatmul.mubr.bf16.gmra.mrb[0].mxu0 %v906
      %v1034 = vpop.f32.mrb[0].mxu0
      %v1035 = vadd.f32 %v942, %v1034
      %v1036 = vpop.f32.mrb[0].mxu0
      %v1037 = vpop.f32.mrb[0].mxu0
      %v1038 = vadd.f32 %v942, %v1037
      %v1039 = vpop.f32.mrb[0].mxu0
      %1040 = vmatprep.mubr.bf16.mxu0 0
      %1041 = vmatmul.mubr.bf16.gmra.mrb[0].mxu0 %v907
      %v1042 = vpop.f32.mrb[0].mxu0
      %v1043 = vadd.f32 %v942, %v1042
      %v1044 = vpop.f32.mrb[0].mxu0
      %v1045 = vpop.f32.mrb[0].mxu0
      %v1046 = vadd.f32 %v942, %v1045
      %v1047 = vpop.f32.mrb[0].mxu0
      %1048 = vmatprep.mubr.bf16.mxu0 0
      %1049 = vmatmul.mubr.bf16.gmra.mrb[0].mxu0 %v908
      %v1050 = vpop.f32.mrb[0].mxu0
      %v1051 = vadd.f32 %v942, %v1050
      %v1052 = vpop.f32.mrb[0].mxu0
      %v1053 = vpop.f32.mrb[0].mxu0
      %v1054 = vadd.f32 %v942, %v1053
      %v1055 = vpop.f32.mrb[0].mxu0
      %1056 = vmatprep.mubr.bf16.mxu0 0
      %1057 = vmatmul.mubr.bf16.gmra.mrb[0].mxu0 %v909
      %v1058 = vpop.f32.mrb[0].mxu0
      %v1059 = vadd.f32 %v942, %v1058
      %v1060 = vpop.f32.mrb[0].mxu0
      %v1061 = vpop.f32.mrb[0].mxu0
      %v1062 = vadd.f32 %v942, %v1061
      %v1063 = vpop.f32.mrb[0].mxu0
      %1064 = vmatprep.mubr.bf16.mxu0 0
      %1065 = vmatmul.mubr.bf16.gmra.mrb[0].mxu0 %v910
      %v1066 = vpop.f32.mrb[0].mxu0
      %v1067 = vadd.f32 %v942, %v1066
      %v1068 = vpop.f32.mrb[0].mxu0
      %v1069 = vpop.f32.mrb[0].mxu0
      %v1070 = vadd.f32 %v942, %v1069
      %v1071 = vpop.f32.mrb[0].mxu0
      %1072 = vmatprep.mubr.bf16.mxu0 0
      %1073 = vmatmul.mubr.bf16.gmra.mrb[0].mxu0 %v911
      %v1074 = vpop.f32.mrb[0].mxu0
      %v1075 = vadd.f32 %v942, %v1074
      %v1076 = vpop.f32.mrb[0].mxu0
      %v1077 = vpop.f32.mrb[0].mxu0
      %v1078 = vadd.f32 %v942, %v1077
      %v1079 = vpop.f32.mrb[0].mxu0
      %1080 = vmatprep.mubr.bf16.mxu0 0
      %1081 = vmatmul.mubr.bf16.gmra.mrb[0].mxu0 %v912
      %v1082 = vpop.f32.mrb[0].mxu0
      %v1083 = vadd.f32 %v942, %v1082
      %v1084 = vpop.f32.mrb[0].mxu0
      %v1085 = vpop.f32.mrb[0].mxu0
      %v1086 = vadd.f32 %v942, %v1085
      %v1087 = vpop.f32.mrb[0].mxu0
      %1088 = vmatprep.mubr.bf16.mxu0 0
      %1089 = vmatmul.mubr.bf16.gmra.mrb[0].mxu0 %v913
      %v1090 = vpop.f32.mrb[0].mxu0
      %v1091 = vadd.f32 %v942, %v1090
      %v1092 = vpop.f32.mrb[0].mxu0
      %v1093 = vpop.f32.mrb[0].mxu0
      %v1094 = vadd.f32 %v942, %v1093
      %v1095 = vpop.f32.mrb[0].mxu0
      %1096 = vmatprep.mubr.bf16.mxu0 0
      %1097 = vmatmul.mubr.bf16.gmra.mrb[0].mxu0 %v914
      %v1098 = vpop.f32.mrb[0].mxu0
      %v1099 = vadd.f32 %v942, %v1098
      %v1100 = vpop.f32.mrb[0].mxu0
      %v1101 = vpop.f32.mrb[0].mxu0
      %v1102 = vadd.f32 %v942, %v1101
      %v1103 = vpop.f32.mrb[0].mxu0
      %1104 = vmatprep.mubr.bf16.mxu0 0
      %1105 = vmatmul.mubr.bf16.gmra.mrb[0].mxu0 %v915
      %v1106 = vpop.f32.mrb[0].mxu0
      %v1107 = vadd.f32 %v942, %v1106
      %v1108 = vpop.f32.mrb[0].mxu0
      %v1109 = vpop.f32.mrb[0].mxu0
      %v1110 = vadd.f32 %v942, %v1109
      %v1111 = vpop.f32.mrb[0].mxu0
      %1112 = vmatprep.mubr.bf16.mxu0 0
      %1113 = vmatmul.mubr.bf16.gmra.mrb[0].mxu0 %v916
      %v1114 = vpop.f32.mrb[0].mxu0
      %v1115 = vadd.f32 %v942, %v1114
      %v1116 = vpop.f32.mrb[0].mxu0
      %v1117 = vpop.f32.mrb[0].mxu0
      %v1118 = vadd.f32 %v942, %v1117
      %v1119 = vpop.f32.mrb[0].mxu0
      %1120 = vmatprep.mubr.bf16.mxu0 0
      %1121 = vmatmul.mubr.bf16.gmra.mrb[0].mxu0 %v917
      %v1122 = vpop.f32.mrb[0].mxu0
      %v1123 = vadd.f32 %v942, %v1122
      %v1124 = vpop.f32.mrb[0].mxu0
      %v1125 = vpop.f32.mrb[0].mxu0
      %v1126 = vadd.f32 %v942, %v1125
      %v1127 = vpop.f32.mrb[0].mxu0
      %1128 = vmatprep.mubr.bf16.mxu0 0
      %1129 = vmatmul.mubr.bf16.gmra.mrb[0].mxu0 %v918
      %v1130 = vpop.f32.mrb[0].mxu0
      %v1131 = vadd.f32 %v942, %v1130
      %v1132 = vpop.f32.mrb[0].mxu0
      %v1133 = vpop.f32.mrb[0].mxu0
      %v1134 = vadd.f32 %v942, %v1133
      %v1135 = vpop.f32.mrb[0].mxu0
      %1136 = vmatprep.mubr.bf16.mxu0 0
      %1137 = vmatmul.mubr.bf16.gmra.mrb[0].mxu0 %v919
      %v1138 = vpop.f32.mrb[0].mxu0
      %v1139 = vadd.f32 %v942, %v1138
      %v1140 = vpop.f32.mrb[0].mxu0
      %v1141 = vpop.f32.mrb[0].mxu0
      %v1142 = vadd.f32 %v942, %v1141
      %v1143 = vpop.f32.mrb[0].mxu0
      %1144 = vmatprep.mubr.bf16.mxu0 0
      %1145 = vmatmul.mubr.bf16.gmra.mrb[0].mxu0 %v920
      %v1146 = vpop.f32.mrb[0].mxu0
      %v1147 = vadd.f32 %v942, %v1146
      %v1148 = vpop.f32.mrb[0].mxu0
      %v1149 = vpop.f32.mrb[0].mxu0
      %v1150 = vadd.f32 %v942, %v1149
      %v1151 = vpop.f32.mrb[0].mxu0
      %1152 = vdwg.mxu0
      %vm1153 = vcmp.gt.f32.partialorder %v1027, 0.0
      %vm1154 = vcmp.gt.f32.partialorder %v1030, 0.0
      %vm1155 = vcmp.gt.f32.partialorder %v1035, 0.0
      %vm1156 = vcmp.gt.f32.partialorder %v1038, 0.0
      %vm1157 = vcmp.gt.f32.partialorder %v1043, 0.0
      %vm1158 = vcmp.gt.f32.partialorder %v1046, 0.0
      %vm1159 = vcmp.gt.f32.partialorder %v1051, 0.0
      %vm1160 = vcmp.gt.f32.partialorder %v1054, 0.0
      %vm1161 = vcmp.gt.f32.partialorder %v1059, 0.0
      %vm1162 = vcmp.gt.f32.partialorder %v1062, 0.0
      %vm1163 = vcmp.gt.f32.partialorder %v1067, 0.0
      %vm1164 = vcmp.gt.f32.partialorder %v1070, 0.0
      %vm1165 = vcmp.gt.f32.partialorder %v1075, 0.0
      %vm1166 = vcmp.gt.f32.partialorder %v1078, 0.0
      %vm1167 = vcmp.gt.f32.partialorder %v1083, 0.0
      %vm1168 = vcmp.gt.f32.partialorder %v1086, 0.0
      %vm1169 = vcmp.gt.f32.partialorder %v1091, 0.0
      %vm1170 = vcmp.gt.f32.partialorder %v1094, 0.0
      %vm1171 = vcmp.gt.f32.partialorder %v1099, 0.0
      %vm1172 = vcmp.gt.f32.partialorder %v1102, 0.0
      %vm1173 = vcmp.gt.f32.partialorder %v1107, 0.0
      %vm1174 = vcmp.gt.f32.partialorder %v1110, 0.0
      %vm1175 = vcmp.gt.f32.partialorder %v1115, 0.0
      %vm1176 = vcmp.gt.f32.partialorder %v1118, 0.0
      %vm1177 = vcmp.gt.f32.partialorder %v1123, 0.0
      %vm1178 = vcmp.gt.f32.partialorder %v1126, 0.0
      %vm1179 = vcmp.gt.f32.partialorder %v1131, 0.0
      %vm1180 = vcmp.gt.f32.partialorder %v1134, 0.0
      %vm1181 = vcmp.gt.f32.partialorder %v1139, 0.0
      %vm1182 = vcmp.gt.f32.partialorder %v1142, 0.0
      %vm1183 = vcmp.gt.f32.partialorder %v1147, 0.0
      %vm1184 = vcmp.gt.f32.partialorder %v1150, 0.0
      %v1185 = vmul.f32 %v1027, 0.1
      %v1186 = vmul.f32 %v1030, 0.1
      %v1187 = vmul.f32 %v1035, 0.1
      %v1188 = vmul.f32 %v1038, 0.1
      %v1189 = vmul.f32 %v1043, 0.1
      %v1190 = vmul.f32 %v1046, 0.1
      %v1191 = vmul.f32 %v1051, 0.1
      %v1192 = vmul.f32 %v1054, 0.1
      %v1193 = vmul.f32 %v1059, 0.1
      %v1194 = vmul.f32 %v1062, 0.1
      %v1195 = vmul.f32 %v1067, 0.1
      %v1196 = vmul.f32 %v1070, 0.1
      %v1197 = vmul.f32 %v1075, 0.1
      %v1198 = vmul.f32 %v1078, 0.1
      %v1199 = vmul.f32 %v1083, 0.1
      %v1200 = vmul.f32 %v1086, 0.1
      %v1201 = vmul.f32 %v1091, 0.1
      %v1202 = vmul.f32 %v1094, 0.1
      %v1203 = vmul.f32 %v1099, 0.1
      %v1204 = vmul.f32 %v1102, 0.1
      %v1205 = vmul.f32 %v1107, 0.1
      %v1206 = vmul.f32 %v1110, 0.1
      %v1207 = vmul.f32 %v1115, 0.1
      %v1208 = vmul.f32 %v1118, 0.1
      %v1209 = vmul.f32 %v1123, 0.1
      %v1210 = vmul.f32 %v1126, 0.1
      %v1211 = vmul.f32 %v1131, 0.1
      %v1212 = vmul.f32 %v1134, 0.1
      %v1213 = vmul.f32 %v1139, 0.1
      %v1214 = vmul.f32 %v1142, 0.1
      %v1215 = vmul.f32 %v1147, 0.1
      %v1216 = vmul.f32 %v1150, 0.1
      %v1217 = vsel %vm1153, %v1027, %v1185
      %v1218 = vsel %vm1154, %v1030, %v1186
      %v1219 = vsel %vm1155, %v1035, %v1187
      %v1220 = vsel %vm1156, %v1038, %v1188
      %v1221 = vsel %vm1157, %v1043, %v1189
      %v1222 = vsel %vm1158, %v1046, %v1190
      %v1223 = vsel %vm1159, %v1051, %v1191
      %v1224 = vsel %vm1160, %v1054, %v1192
      %v1225 = vsel %vm1161, %v1059, %v1193
      %v1226 = vsel %vm1162, %v1062, %v1194
      %v1227 = vsel %vm1163, %v1067, %v1195
      %v1228 = vsel %vm1164, %v1070, %v1196
      %v1229 = vsel %vm1165, %v1075, %v1197
      %v1230 = vsel %vm1166, %v1078, %v1198
      %v1231 = vsel %vm1167, %v1083, %v1199
      %v1232 = vsel %vm1168, %v1086, %v1200
      %v1233 = vsel %vm1169, %v1091, %v1201
      %v1234 = vsel %vm1170, %v1094, %v1202
      %v1235 = vsel %vm1171, %v1099, %v1203
      %v1236 = vsel %vm1172, %v1102, %v1204
      %v1237 = vsel %vm1173, %v1107, %v1205
      %v1238 = vsel %vm1174, %v1110, %v1206
      %v1239 = vsel %vm1175, %v1115, %v1207
      %v1240 = vsel %vm1176, %v1118, %v1208
      %v1241 = vsel %vm1177, %v1123, %v1209
      %v1242 = vsel %vm1178, %v1126, %v1210
      %v1243 = vsel %vm1179, %v1131, %v1211
      %v1244 = vsel %vm1180, %v1134, %v1212
      %v1245 = vsel %vm1181, %v1139, %v1213
      %v1246 = vsel %vm1182, %v1142, %v1214
      %v1247 = vsel %vm1183, %v1147, %v1215
      %v1248 = vsel %vm1184, %v1150, %v1216
      %v1249 = vadd.f32 %v1217, %v1218
      %v1250 = vadd.f32 %v1249, %v1219
      %v1251 = vadd.f32 %v1250, %v1220
      %v1252 = vadd.f32 %v1251, %v1221
      %v1253 = vadd.f32 %v1252, %v1222
      %v1254 = vadd.f32 %v1253, %v1223
      %v1255 = vadd.f32 %v1254, %v1224
      %v1256 = vadd.f32 %v1255, %v1225
      %v1257 = vadd.f32 %v1256, %v1226
      %v1258 = vadd.f32 %v1257, %v1227
      %v1259 = vadd.f32 %v1258, %v1228
      %v1260 = vadd.f32 %v1259, %v1229
      %v1261 = vadd.f32 %v1260, %v1230
      %v1262 = vadd.f32 %v1261, %v1231
      %v1263 = vadd.f32 %v1262, %v1232
      %v1264 = vadd.f32 %v1263, %v1233
      %v1265 = vadd.f32 %v1264, %v1234
      %v1266 = vadd.f32 %v1265, %v1235
      %v1267 = vadd.f32 %v1266, %v1236
      %v1268 = vadd.f32 %v1267, %v1237
      %v1269 = vadd.f32 %v1268, %v1238
      %v1270 = vadd.f32 %v1269, %v1239
      %v1271 = vadd.f32 %v1270, %v1240
      %v1272 = vadd.f32 %v1271, %v1241
      %v1273 = vadd.f32 %v1272, %v1242
      %v1274 = vadd.f32 %v1273, %v1243
      %v1275 = vadd.f32 %v1274, %v1244
      %v1276 = vadd.f32 %v1275, %v1245
      %v1277 = vadd.f32 %v1276, %v1246
      %v1278 = vadd.f32 %v1277, %v1247
      %v1279 = vadd.f32 %v1278, %v1248
      %v1280 = vrot.slane %v1279, 4
      %v1281 = vadd.f32 %v1279, %v1280
      %v1282 = vrot.slane %v1281, 2
      %v1283 = vadd.f32 %v1281, %v1282
      %v1284 = vrot.slane %v1283, 1
      %v1285 = vadd.f32 %v1283, %v1284
      %v1286 = vld [vmem:[%s6] sm:$0xff]
      %v1287 = vld [vmem:[%s6 + $0x8] sm:$0xff]
      %v1288 = vld [vmem:[%s6 + $0x10] sm:$0xff]
      %v1289 = vld [vmem:[%s6 + $0x18] sm:$0xff]
      %v1290 = vld [vmem:[%s6 + $0x20] sm:$0xff]
      %v1291 = vld [vmem:[%s6 + $0x28] sm:$0xff]
      %v1292 = vld [vmem:[%s6 + $0x30] sm:$0xff]
      %v1293 = vld [vmem:[%s6 + $0x38] sm:$0xff]
      %v1294 = vld [vmem:[%s6 + $0x40] sm:$0xff]
      %v1295 = vld [vmem:[%s6 + $0x48] sm:$0xff]
      %v1296 = vld [vmem:[%s6 + $0x50] sm:$0xff]
      %v1297 = vld [vmem:[%s6 + $0x58] sm:$0xff]
      %v1298 = vld [vmem:[%s6 + $0x60] sm:$0xff]
      %v1299 = vld [vmem:[%s6 + $0x68] sm:$0xff]
      %v1300 = vld [vmem:[%s6 + $0x70] sm:$0xff]
      %v1301 = vld [vmem:[%s6 + $0x78] sm:$0xff]
      %v1302 = vld [vmem:[%s7] sm:$0x1]
      %1303 = vmatprep.subr.mxu0 0.0
      %1304 = vmatpush1.msra.mxu0 %v1286
      %1305 = vmatprep.subr.mxu0 0.0
      %1306 = vmatpush1.msra.mxu0 %v1287
      %1307 = vmatprep.subr.mxu0 0.0
      %1308 = vmatpush1.msra.mxu0 %v1288
      %1309 = vmatprep.subr.mxu0 0.0
      %1310 = vmatpush1.msra.mxu0 %v1289
      %1311 = vmatprep.subr.mxu0 0.0
      %1312 = vmatpush1.msra.mxu0 %v1290
      %1313 = vmatprep.subr.mxu0 0.0
      %1314 = vmatpush1.msra.mxu0 %v1291
      %1315 = vmatprep.subr.mxu0 0.0
      %1316 = vmatpush1.msra.mxu0 %v1292
      %1317 = vmatprep.subr.mxu0 0.0
      %1318 = vmatpush1.msra.mxu0 %v1293
      %1319 = vmatprep.subr.mxu0 0.0
      %1320 = vmatpush1.msra.mxu0 %v1294
      %1321 = vmatprep.subr.mxu0 0.0
      %1322 = vmatpush1.msra.mxu0 %v1295
      %1323 = vmatprep.subr.mxu0 0.0
      %1324 = vmatpush1.msra.mxu0 %v1296
      %1325 = vmatprep.subr.mxu0 0.0
      %1326 = vmatpush1.msra.mxu0 %v1297
      %1327 = vmatprep.subr.mxu0 0.0
      %1328 = vmatpush1.msra.mxu0 %v1298
      %1329 = vmatprep.subr.mxu0 0.0
      %1330 = vmatpush1.msra.mxu0 %v1299
      %1331 = vmatprep.subr.mxu0 0.0
      %1332 = vmatpush1.msra.mxu0 %v1300
      %1333 = vmatprep.subr.mxu0 0.0
      %1334 = vmatpush1.msra.mxu0 %v1301
      %1335 = vmatprep.subr.mxu0 0.0
      %1336 = vmatpush1.msra.mxu0 0.0
      %1337 = vmatprep.subr.mxu0 0.0
      %1338 = vmatpush1.msra.mxu0 0.0
      %1339 = vmatprep.subr.mxu0 0.0
      %1340 = vmatpush1.msra.mxu0 0.0
      %1341 = vmatprep.subr.mxu0 0.0
      %1342 = vmatpush1.msra.mxu0 0.0
      %1343 = vmatprep.subr.mxu0 0.0
      %1344 = vmatpush1.msra.mxu0 0.0
      %1345 = vmatprep.subr.mxu0 0.0
      %1346 = vmatpush1.msra.mxu0 0.0
      %1347 = vmatprep.subr.mxu0 0.0
      %1348 = vmatpush1.msra.mxu0 0.0
      %1349 = vmatprep.subr.mxu0 0.0
      %1350 = vmatpush1.msra.mxu0 0.0
      %1351 = vmatprep.subr.mxu0 0.0
      %1352 = vmatpush1.msra.mxu0 0.0
      %1353 = vmatprep.subr.mxu0 0.0
      %1354 = vmatpush1.msra.mxu0 0.0
      %1355 = vmatprep.subr.mxu0 0.0
      %1356 = vmatpush1.msra.mxu0 0.0
      %1357 = vmatprep.subr.mxu0 0.0
      %1358 = vmatpush1.msra.mxu0 0.0
      %1359 = vmatprep.subr.mxu0 0.0
      %1360 = vmatpush1.msra.mxu0 0.0
      %1361 = vmatprep.subr.mxu0 0.0
      %1362 = vmatpush1.msra.mxu0 0.0
      %1363 = vmatprep.subr.mxu0 0.0
      %1364 = vmatpush1.msra.mxu0 0.0
      %1365 = vmatprep.subr.mxu0 0.0
      %1366 = vmatpush1.msra.mxu0 0.0
      %1367 = vmatprep.mubr.f32.mxu0 0.0
      %1368 = vmatmul.mubr.f32.gmra.mrb[0].mxu0 %v1285
      %v1369 = vpop.f32.mrb[0].mxu0
      %v1370 = vadd.f32 %v1302, %v1369
      %v1371 = vpop.f32.mrb[0].mxu0
      %1372 = vdwg.mxu0
      %v1373 = vlaneseq
      %v1374 = vshrl.u32 %v1373, 7
      %v1375 = vsub.s32 0, %v1374
      %v1376 = vrot.slane %v1370, %v1375
      %1377 = vst [vmem:[%s303] sm:$0xff] %v1376
      %p1378 = scmp.lt.s32.totalorder %s19, 1
      %s1379 = scalar_select %p1378, %s19, 1
      %s1380 = smul.addr %s1379, 8
      %s1381 = scalar_lea.vmem %s8, %s1380
      // Predicated region
      $region53: #{total_net_forward.1} parent=51 // pred_check
        %p1382 = pneg %p210
      $region54: #{total_net_forward.1} parent=51 // pred_check_branch
        %1384 = sbr.rel (%p1382) target = $region56
      $region55: #{total_net_forward.1} parent=51 // pred_region
        _
      $region56: #{total_net_forward.1} parent=51 // pred_fallthru
        _
    $region52: #{total_net_forward.1} parent=5 // pred_fallthru
      _
    %p1385 = scmp.le.s32.totalorder 2, %s14
    // Predicated region
    $region57: #{total_net_forward.1} parent=5 // pred_check
      %p1386 = pneg %p1385
    $region58: #{total_net_forward.1} parent=5 // pred_check_branch
      %1388 = sbr.rel (%p1386) target = $region60
    $region59: #{total_net_forward.1} parent=5 // pred_region
      %s1389 = ssub.s32 %s14, 2
      // Predicated region
      $region61: #{total_net_forward.1} parent=59 // pred_check
        %p1390 = pneg %p216
      $region62: #{total_net_forward.1} parent=59 // pred_check_branch
        %1392 = sbr.rel (%p1390) target = $region64
      $region63: #{total_net_forward.1} parent=59 // pred_region
        %p1393 = scmp.lt.s32.totalorder %s20, 1
        %s1394 = scalar_select %p1393, %s20, 1
        %s1395 = smul.addr %s1394, 8
        %s1396 = scalar_lea.vmem %s8, %s1395
      $region64: #{total_net_forward.1} parent=59 // pred_fallthru
        _
    $region60: #{total_net_forward.1} parent=5 // pred_fallthru
      _
  $region6: #{total_net_forward.1} parent=0 // loop_footer
    %s18 = sadd.s32 1, %s14
  $region7: #{total_net_forward.1} parent=0 // loop_footer_branch
    %13 = sbr.rel target = $region3
  $region8: #{total_net_forward.1} parent=0 // loop_exit
    _

</llo_original>
